<compile_context>
chip_gen: v7x
topology: tpu7x:2x2x1
jax: 0.10.0
libtpu: 0.0.40
codegen_flags: <defaults>
</compile_context>

<pallas_src>
import jax
import jax.numpy as jnp
from jax.experimental import pallas as pl
from jax.experimental.pallas import tpu as pltpu

NEG_SLOPE = 0.01   # torch.nn.functional.leaky_relu default
K_PAD = 32         # padded state_dim + action_dim contraction width
BATCH_TILE = 128   # batch block for the weight-resident gridded path


def _leaky_relu(x):
    return jnp.where(x > 0, x, NEG_SLOPE * x)


def critic_kernel(xu_ref,
                  w1_ref, b1_ref,
                  w2a_ref, b2a_ref, w2b_ref, b2b_ref,
                  w3a_ref, b3a_ref, w3b_ref, b3b_ref,
                  q_ref):
    # bf16 operands for the MXU; f32 accumulation + f32 elementwise math.
    xu = xu_ref[...].astype(jnp.bfloat16)                       # (B, 32)

    # Layer 1 of both heads fused: (B,32) @ (32,800). Cols 0:400 = Q1, 400:800 = Q2.
    h = jnp.dot(xu, w1_ref[...], preferred_element_type=jnp.float32) + b1_ref[...]
    h = _leaky_relu(h).astype(jnp.bfloat16)                     # (B, 800)

    # Layer 2 per head (no zero-padded block-diagonal): two (.,400)@(400,300) dots.
    # The slice at column 400 crosses a 128-lane boundary -> tiny (~6 KB) copy.
    h1 = h[:, :400]
    h2 = h[:, 400:]
    z1 = jnp.dot(h1, w2a_ref[...], preferred_element_type=jnp.float32) + b2a_ref[...]
    z2 = jnp.dot(h2, w2b_ref[...], preferred_element_type=jnp.float32) + b2b_ref[...]
    z1 = _leaky_relu(z1).astype(jnp.bfloat16)                   # (B, 300)
    z2 = _leaky_relu(z2).astype(jnp.bfloat16)                   # (B, 300)

    # Layer 3 per head: (B,300)@(300,1); single lane-dense (B,2) store.
    q1 = jnp.dot(z1, w3a_ref[...], preferred_element_type=jnp.float32) + b3a_ref[...]
    q2 = jnp.dot(z2, w3b_ref[...], preferred_element_type=jnp.float32) + b3b_ref[...]
    q_ref[...] = jnp.concatenate([q1, q2], axis=1).astype(q_ref.dtype)


def fuse_params(params, state_dim, action_dim):
    """One-time offline weight prep: fuse+pad layer 1, keep layers 2/3 per head."""
    in_dim = state_dim + action_dim
    w1 = jnp.concatenate([params["w1"], params["w4"]], axis=1)        # (S+A, 800)
    w1 = jnp.pad(w1, ((0, K_PAD - in_dim), (0, 0)))                   # (32, 800)
    b1 = jnp.concatenate([params["b1"], params["b4"]], axis=1)        # (1, 800)
    bf16 = jnp.bfloat16
    return dict(
        w1=w1.astype(bf16), b1=b1,
        w2a=params["w2"].astype(bf16), b2a=params["b2"],              # (400,300)
        w2b=params["w5"].astype(bf16), b2b=params["b5"],              # (400,300)
        w3a=params["w3"].astype(bf16), b3a=params["b3"],              # (300,1)
        w3b=params["w6"].astype(bf16), b3b=params["b6"],              # (300,1)
    )


@jax.jit
def critic_forward(x, u, fused):
    """x: (B, state_dim), u: (B, action_dim) -> (q1, q2), each (B, 1) f32."""
    B = x.shape[0]
    xu = jnp.concatenate([x, u], axis=1)
    xu = jnp.pad(xu, ((0, 0), (0, K_PAD - xu.shape[1])))              # (B, 32)

    weights = (fused["w1"], fused["b1"],
               fused["w2a"], fused["b2a"], fused["w2b"], fused["b2b"],
               fused["w3a"], fused["b3a"], fused["w3b"], fused["b3b"])

    w_bytes = sum(int(w.size) * w.dtype.itemsize for w in weights)
    flops = 2 * B * (K_PAD * 800 + 2 * 400 * 300 + 2 * 300 * 1)
    cost = pl.CostEstimate(
        flops=flops,
        transcendentals=0,
        bytes_accessed=w_bytes + int(xu.size) * 4 + B * 2 * 4,
    )
    out_shape = jax.ShapeDtypeStruct((B, 2), jnp.float32)

    if B % BATCH_TILE == 0 and B // BATCH_TILE >= 2:
        # Weight-resident gridded path: weights DMA'd once (constant index_map),
        # activations streamed in (BATCH_TILE, .) blocks; batch axis "parallel"
        # so v7x splits it across its 2 TensorCores.
        grid = (B // BATCH_TILE,)
        xu_spec = pl.BlockSpec((BATCH_TILE, K_PAD), lambda i: (i, 0))
        w_specs = [pl.BlockSpec(w.shape, lambda i: (0, 0)) for w in weights]
        out_spec = pl.BlockSpec((BATCH_TILE, 2), lambda i: (i, 0))
        q = pl.pallas_call(
            critic_kernel,
            out_shape=out_shape,
            grid=grid,
            in_specs=[xu_spec] + w_specs,
            out_specs=out_spec,
            compiler_params=pltpu.CompilerParams(
                dimension_semantics=("parallel",)),
            cost_estimate=cost,
        )(xu, *weights)
    else:
        # Small batch: single invocation, every operand a full-block VMEM resident.
        spec = pl.BlockSpec(memory_space=pltpu.MemorySpace.VMEM)
        q = pl.pallas_call(
            critic_kernel,
            out_shape=out_shape,
            in_specs=[spec] * (1 + len(weights)),
            out_specs=spec,
            cost_estimate=cost,
        )(xu, *weights)

    return q[:, 0:1], q[:, 1:2]


def init_params(key, state_dim, action_dim):
    """Xavier-normal weights (as in weights_init) + nn.Linear-style biases (f32)."""
    in_dim = state_dim + action_dim
    dims = [(in_dim, 400), (400, 300), (300, 1),
            (in_dim, 400), (400, 300), (300, 1)]
    params = {}
    keys = jax.random.split(key, len(dims))
    for i, ((fan_in, fan_out), k) in enumerate(zip(dims, keys), start=1):
        std = (2.0 / (fan_in + fan_out)) ** 0.5  # xavier_normal gain=1
        params[f"w{i}"] = std * jax.random.normal(k, (fan_in, fan_out), jnp.float32)
        bk = jax.random.fold_in(k, 1234)
        bound = 1.0 / (fan_in ** 0.5)
        params[f"b{i}"] = jax.random.uniform(
            bk, (1, fan_out), jnp.float32, minval=-bound, maxval=bound)
    return params


def reference_forward(x, u, params):
    """Pure-JAX reference using the UNFUSED per-layer params, with the same
    bf16-operand / f32-accumulate precision policy as the kernel."""
    xu = jnp.concatenate([x, u], axis=1)

    def dot_bf16(a, w):
        return jnp.dot(a.astype(jnp.bfloat16), w.astype(jnp.bfloat16),
                       preferred_element_type=jnp.float32)

    def head(wa, ba, wb, bb, wc, bc):
        h = _leaky_relu(dot_bf16(xu, wa) + ba)
        h = _leaky_relu(dot_bf16(h, wb) + bb)
        return dot_bf16(h, wc) + bc

    q1 = head(params["w1"], params["b1"], params["w2"], params["b2"],
              params["w3"], params["b3"])
    q2 = head(params["w4"], params["b4"], params["w5"], params["b5"],
              params["w6"], params["b6"])
    return q1, q2


if __name__ == "__main__":
    key = jax.random.PRNGKey(0)
    state_dim, action_dim = 17, 6

    kx, ku, kp = jax.random.split(key, 3)
    params = init_params(kp, state_dim, action_dim)
    fused = fuse_params(params, state_dim, action_dim)  # one-time weight prep

    # --- small batch (no-grid path) ---
    batch = 8
    x = jax.random.normal(kx, (batch, state_dim), jnp.float32)
    u = jax.random.normal(ku, (batch, action_dim), jnp.float32)
    q1, q2 = critic_forward(x, u, fused)
    jax.block_until_ready((q1, q2))
    rq1, rq2 = reference_forward(x, u, params)
    assert q1.shape == (batch, 1) and q2.shape == (batch, 1)
    assert jnp.allclose(q1, rq1, atol=5e-3, rtol=5e-3), (q1, rq1)
    assert jnp.allclose(q2, rq2, atol=5e-3, rtol=5e-3), (q2, rq2)

    # --- large batch (weight-resident gridded path) ---
    batch_big = 256
    xb = jax.random.normal(jax.random.fold_in(kx, 1), (batch_big, state_dim), jnp.float32)
    ub = jax.random.normal(jax.random.fold_in(ku, 1), (batch_big, action_dim), jnp.float32)
    qb1, qb2 = critic_forward(xb, ub, fused)
    jax.block_until_ready((qb1, qb2))
    rb1, rb2 = reference_forward(xb, ub, params)
    assert qb1.shape == (batch_big, 1) and qb2.shape == (batch_big, 1)
    assert jnp.allclose(qb1, rb1, atol=5e-3, rtol=5e-3)
    assert jnp.allclose(qb2, rb2, atol=5e-3, rtol=5e-3)

    print("KERNEL_OK")
</pallas_src>

<mosaic_0001>
module attributes {stable_mosaic.version = 11 : i64} {
  func.func @critic_kernel(%arg0: memref<8x32xf32, #tpu.memory_space<vmem>>, %arg1: memref<32x800xbf16, #tpu.memory_space<vmem>>, %arg2: memref<1x800xf32, #tpu.memory_space<vmem>>, %arg3: memref<400x300xbf16, #tpu.memory_space<vmem>>, %arg4: memref<1x300xf32, #tpu.memory_space<vmem>>, %arg5: memref<400x300xbf16, #tpu.memory_space<vmem>>, %arg6: memref<1x300xf32, #tpu.memory_space<vmem>>, %arg7: memref<300x1xbf16, #tpu.memory_space<vmem>>, %arg8: memref<1x1xf32, #tpu.memory_space<vmem>>, %arg9: memref<300x1xbf16, #tpu.memory_space<vmem>>, %arg10: memref<1x1xf32, #tpu.memory_space<vmem>>, %arg11: memref<8x2xf32, #tpu.memory_space<vmem>>) attributes {dimension_semantics = [], scalar_prefetch = 0 : i64, scratch_operands = 0 : i64, tpu.core_type = #tpu.core_type<tc>} {
    %c0 = arith.constant 0 : index
    %c0_0 = arith.constant 0 : index
    %0 = vector.load %arg0[%c0, %c0_0] : memref<8x32xf32, #tpu.memory_space<vmem>>, vector<8x32xf32>
    %1 = arith.truncf %0 : vector<8x32xf32> to vector<8x32xbf16>
    %c0_1 = arith.constant 0 : index
    %c0_2 = arith.constant 0 : index
    %2 = vector.load %arg1[%c0_1, %c0_2] : memref<32x800xbf16, #tpu.memory_space<vmem>>, vector<32x800xbf16>
    %cst = arith.constant dense<0.000000e+00> : vector<8x800xf32>
    %3 = tpu.matmul %1, %2, %cst {dimension_numbers = #tpu.dot_dimension_numbers<[1], [0], [0], [1], [0, 0, 1, 1], [], []>} : vector<8x32xbf16>, vector<32x800xbf16>, vector<8x800xf32> -> vector<8x800xf32>
    %c0_3 = arith.constant 0 : index
    %c0_4 = arith.constant 0 : index
    %4 = vector.load %arg2[%c0_3, %c0_4] : memref<1x800xf32, #tpu.memory_space<vmem>>, vector<1x800xf32>
    %5 = vector.broadcast %4 : vector<1x800xf32> to vector<8x800xf32>
    %6 = arith.addf %3, %5 : vector<8x800xf32>
    %cst_5 = arith.constant 0.000000e+00 : f32
    %7 = vector.broadcast %cst_5 : f32 to vector<8x800xf32>
    %8 = arith.cmpf ogt, %6, %7 : vector<8x800xf32>
    %cst_6 = arith.constant 0.00999999977 : f32
    %9 = vector.broadcast %cst_6 : f32 to vector<8x800xf32>
    %10 = arith.mulf %9, %6 : vector<8x800xf32>
    %11 = arith.select %8, %6, %10 : vector<8x800xi1>, vector<8x800xf32>
    %12 = arith.truncf %11 : vector<8x800xf32> to vector<8x800xbf16>
    %13 = vector.extract_strided_slice %12 {offsets = [0, 0], sizes = [8, 400], strides = [1, 1]} : vector<8x800xbf16> to vector<8x400xbf16>
    %14 = vector.extract_strided_slice %12 {offsets = [0, 400], sizes = [8, 400], strides = [1, 1]} : vector<8x800xbf16> to vector<8x400xbf16>
    %c0_7 = arith.constant 0 : index
    %c0_8 = arith.constant 0 : index
    %15 = vector.load %arg3[%c0_7, %c0_8] : memref<400x300xbf16, #tpu.memory_space<vmem>>, vector<400x300xbf16>
    %cst_9 = arith.constant dense<0.000000e+00> : vector<8x300xf32>
    %16 = tpu.matmul %13, %15, %cst_9 {dimension_numbers = #tpu.dot_dimension_numbers<[1], [0], [0], [1], [0, 0, 1, 1], [], []>} : vector<8x400xbf16>, vector<400x300xbf16>, vector<8x300xf32> -> vector<8x300xf32>
    %c0_10 = arith.constant 0 : index
    %c0_11 = arith.constant 0 : index
    %17 = vector.load %arg4[%c0_10, %c0_11] : memref<1x300xf32, #tpu.memory_space<vmem>>, vector<1x300xf32>
    %18 = vector.broadcast %17 : vector<1x300xf32> to vector<8x300xf32>
    %19 = arith.addf %16, %18 : vector<8x300xf32>
    %c0_12 = arith.constant 0 : index
    %c0_13 = arith.constant 0 : index
    %20 = vector.load %arg5[%c0_12, %c0_13] : memref<400x300xbf16, #tpu.memory_space<vmem>>, vector<400x300xbf16>
    %cst_14 = arith.constant dense<0.000000e+00> : vector<8x300xf32>
    %21 = tpu.matmul %14, %20, %cst_14 {dimension_numbers = #tpu.dot_dimension_numbers<[1], [0], [0], [1], [0, 0, 1, 1], [], []>} : vector<8x400xbf16>, vector<400x300xbf16>, vector<8x300xf32> -> vector<8x300xf32>
    %c0_15 = arith.constant 0 : index
    %c0_16 = arith.constant 0 : index
    %22 = vector.load %arg6[%c0_15, %c0_16] : memref<1x300xf32, #tpu.memory_space<vmem>>, vector<1x300xf32>
    %23 = vector.broadcast %22 : vector<1x300xf32> to vector<8x300xf32>
    %24 = arith.addf %21, %23 : vector<8x300xf32>
    %cst_17 = arith.constant 0.000000e+00 : f32
    %25 = vector.broadcast %cst_17 : f32 to vector<8x300xf32>
    %26 = arith.cmpf ogt, %19, %25 : vector<8x300xf32>
    %cst_18 = arith.constant 0.00999999977 : f32
    %27 = vector.broadcast %cst_18 : f32 to vector<8x300xf32>
    %28 = arith.mulf %27, %19 : vector<8x300xf32>
    %29 = arith.select %26, %19, %28 : vector<8x300xi1>, vector<8x300xf32>
    %30 = arith.truncf %29 : vector<8x300xf32> to vector<8x300xbf16>
    %cst_19 = arith.constant 0.000000e+00 : f32
    %31 = vector.broadcast %cst_19 : f32 to vector<8x300xf32>
    %32 = arith.cmpf ogt, %24, %31 : vector<8x300xf32>
    %cst_20 = arith.constant 0.00999999977 : f32
    %33 = vector.broadcast %cst_20 : f32 to vector<8x300xf32>
    %34 = arith.mulf %33, %24 : vector<8x300xf32>
    %35 = arith.select %32, %24, %34 : vector<8x300xi1>, vector<8x300xf32>
    %36 = arith.truncf %35 : vector<8x300xf32> to vector<8x300xbf16>
    %c0_21 = arith.constant 0 : index
    %c0_22 = arith.constant 0 : index
    %37 = vector.load %arg7[%c0_21, %c0_22] : memref<300x1xbf16, #tpu.memory_space<vmem>>, vector<300x1xbf16>
    %cst_23 = arith.constant dense<0.000000e+00> : vector<8x1xf32>
    %38 = tpu.matmul %30, %37, %cst_23 {dimension_numbers = #tpu.dot_dimension_numbers<[1], [0], [0], [1], [0, 0, 1, 1], [], []>} : vector<8x300xbf16>, vector<300x1xbf16>, vector<8x1xf32> -> vector<8x1xf32>
    %c0_24 = arith.constant 0 : index
    %c0_25 = arith.constant 0 : index
    %39 = vector.load %arg8[%c0_24, %c0_25] : memref<1x1xf32, #tpu.memory_space<vmem>>, vector<1x1xf32>
    %40 = vector.broadcast %39 : vector<1x1xf32> to vector<8x1xf32>
    %41 = arith.addf %38, %40 : vector<8x1xf32>
    %c0_26 = arith.constant 0 : index
    %c0_27 = arith.constant 0 : index
    %42 = vector.load %arg9[%c0_26, %c0_27] : memref<300x1xbf16, #tpu.memory_space<vmem>>, vector<300x1xbf16>
    %cst_28 = arith.constant dense<0.000000e+00> : vector<8x1xf32>
    %43 = tpu.matmul %36, %42, %cst_28 {dimension_numbers = #tpu.dot_dimension_numbers<[1], [0], [0], [1], [0, 0, 1, 1], [], []>} : vector<8x300xbf16>, vector<300x1xbf16>, vector<8x1xf32> -> vector<8x1xf32>
    %c0_29 = arith.constant 0 : index
    %c0_30 = arith.constant 0 : index
    %44 = vector.load %arg10[%c0_29, %c0_30] : memref<1x1xf32, #tpu.memory_space<vmem>>, vector<1x1xf32>
    %45 = vector.broadcast %44 : vector<1x1xf32> to vector<8x1xf32>
    %46 = arith.addf %43, %45 : vector<8x1xf32>
    %47 = tpu.concatenate %41, %46 in 1 : vector<8x1xf32>, vector<8x1xf32> -> vector<8x2xf32>
    %c0_31 = arith.constant 0 : index
    %c0_32 = arith.constant 0 : index
    %48 = vector.load %arg11[%c0_31, %c0_32] : memref<8x2xf32, #tpu.memory_space<vmem>>, vector<8x2xf32>
    tpu.vector_store %arg11[%c0_31, %c0_32], %47 {strides = array<i32>} : memref<8x2xf32, #tpu.memory_space<vmem>>, vector<8x2xf32>,
    return
  }
}

</mosaic_0001>

<llo_original>
// kernel: critic_forward.1
$region0: #{critic_forward.1}
  #allocation0 [shape = 'u32[]', space=smem, size = 0x4, offset = 0x4, fixed_abs, tag = 'smem constant byte address 0x4 - core index']
  #allocation1 [shape = 'u32[144,128]{1,0:T(1,128)}', space=vmem, size = 0x12000, scoped, tag = 'internal scratch']
  #allocation2 [shape = 'f32[1,1]{1,0:T(1,128)S(1)}', space=vmem, size = 0x200, scoped, tag = 'scoped memory for critic_forward.1']
  #allocation3 [shape = 'f32[1,1]{1,0:T(1,128)S(1)}', space=vmem, size = 0x200, scoped, tag = 'scoped memory for critic_forward.1']
  %s0 = inlined_call_operand.vmem [shape: f32[8,32], index: 0, kind: input, shape index: {}]
  %s1 = inlined_call_operand.vmem [shape: bf16[32,800], index: 1, kind: input, shape index: {}]
  %s2 = inlined_call_operand.vmem [shape: f32[1,800], index: 2, kind: input, shape index: {}]
  %s3 = inlined_call_operand.hbm [shape: bf16[400,300], index: 3, kind: input, shape index: {}]
  %s4 = inlined_call_operand.vmem [shape: f32[1,300], index: 4, kind: input, shape index: {}]
  %s5 = inlined_call_operand.hbm [shape: bf16[400,300], index: 5, kind: input, shape index: {}]
  %s6 = inlined_call_operand.vmem [shape: f32[1,300], index: 6, kind: input, shape index: {}]
  %s7 = inlined_call_operand.vmem [shape: bf16[300,1], index: 7, kind: input, shape index: {}]
  %s8 = inlined_call_operand.<no memory space> [shape: f32[1,1], index: 8, kind: input, shape index: {}]
  %s9 = inlined_call_operand.vmem [shape: bf16[300,1], index: 9, kind: input, shape index: {}]
  %s10 = inlined_call_operand.<no memory space> [shape: f32[1,1], index: 10, kind: input, shape index: {}]
  %s11 = inlined_call_operand.vmem [shape: f32[8,2], index: 11, kind: output, shape index: {}]
  %s12 = sld [smem:[#allocation0]]
  $region62: #{critic_forward.1} parent=0
    _
  %s14 = ssub.s32 1, %s12
  %s15 = scalar_select 0, %s14, %s12
  %v16 = vstv %s8
  %17 = vst [vmem:[#allocation2] sm:$0x1] %v16
  %v18 = vstv %s10
  %19 = vst [vmem:[#allocation3] sm:$0x1] %v18
  $region1: #{critic_forward.1} parent=0
    #allocation4 [shape = 'u8[307200]{0}', space=vmem, size = 0x4b000, scoped, tag = 'input window, operand 3, single buffered']
    #allocation5 [shape = 's32[1]{0}', space=sflag, size = 0x4, scoped, tag = 'scoped memory for critic_forward.1']
    #allocation6 [shape = 'u8[307200]{0}', space=vmem, size = 0x4b000, scoped, tag = 'input window, operand 5, single buffered']
    #allocation7 [shape = 's32[1]{0}', space=sflag, size = 0x4, scoped, tag = 'scoped memory for critic_forward.1']
    %20 = vsyncpa [#allocation5], 0
    %21 = vsyncpa [#allocation7], 0
    // Predicated region
    $region2: #{critic_forward.1} parent=1 // pred_check
      _
    $region3: #{critic_forward.1} parent=1 // pred_check_branch
      %23 = sbr.rel (0) target = $region5
    $region4: #{critic_forward.1} parent=1 // pred_region
      _
    $region5: #{critic_forward.1} parent=1 // pred_fallthru
      _
    // Predicated region
    $region6: #{critic_forward.1} parent=1 // pred_check
      _
    $region7: #{critic_forward.1} parent=1 // pred_check_branch
      %25 = sbr.rel (0) target = $region9
    $region8: #{critic_forward.1} parent=1 // pred_region
      _
    $region9: #{critic_forward.1} parent=1 // pred_fallthru
      _
    // Predicated region
    $region10: #{critic_forward.1} parent=1 // pred_check
      _
    $region11: #{critic_forward.1} parent=1 // pred_check_branch
      %27 = sbr.rel (0) target = $region13
    $region12: #{critic_forward.1} parent=1 // pred_region
      _
    $region13: #{critic_forward.1} parent=1 // pred_fallthru
      _
    // Predicated region
    $region14: #{critic_forward.1} parent=1 // pred_check
      _
    $region15: #{critic_forward.1} parent=1 // pred_check_branch
      %29 = sbr.rel (0) target = $region17
    $region16: #{critic_forward.1} parent=1 // pred_region
      %s31 = ssub.s32 9600, 9600
      %32 = vsyncadd [#allocation5], %s31
      %s33 = sshll.u32 [#allocation4], 4
      %s34 = int_to_ptr.vmem [resolvable:$true] %s33
      %39 = dma.hbm_to_vmem [thread:$0]  %s3, 9600, %s34, [#allocation5], 192, 192, 12
    $region17: #{critic_forward.1} parent=1 // pred_fallthru
      _
    // Predicated region
    $region18: #{critic_forward.1} parent=1 // pred_check
      _
    $region19: #{critic_forward.1} parent=1 // pred_check_branch
      %41 = sbr.rel (0) target = $region21
    $region20: #{critic_forward.1} parent=1 // pred_region
      _
    $region21: #{critic_forward.1} parent=1 // pred_fallthru
      _
    // Predicated region
    $region22: #{critic_forward.1} parent=1 // pred_check
      _
    $region23: #{critic_forward.1} parent=1 // pred_check_branch
      %43 = sbr.rel (0) target = $region25
    $region24: #{critic_forward.1} parent=1 // pred_region
      %s45 = ssub.s32 9600, 9600
      %46 = vsyncadd [#allocation7], %s45
      %s47 = sshll.u32 [#allocation6], 4
      %s48 = int_to_ptr.vmem [resolvable:$true] %s47
      %53 = dma.hbm_to_vmem [thread:$0]  %s5, 9600, %s48, [#allocation7], 192, 192, 12
    $region25: #{critic_forward.1} parent=1 // pred_fallthru
      _
    // Predicated region
    $region26: #{critic_forward.1} parent=1 // pred_check
      _
    $region27: #{critic_forward.1} parent=1 // pred_check_branch
      %55 = sbr.rel (0) target = $region29
    $region28: #{critic_forward.1} parent=1 // pred_region
      _
    $region29: #{critic_forward.1} parent=1 // pred_fallthru
      _
    // Predicated region
    $region30: #{critic_forward.1} parent=1 // pred_check
      _
    $region31: #{critic_forward.1} parent=1 // pred_check_branch
      %57 = sbr.rel (0) target = $region33
    $region32: #{critic_forward.1} parent=1 // pred_region
      _
    $region33: #{critic_forward.1} parent=1 // pred_fallthru
      _
    // Predicated region
    $region34: #{critic_forward.1} parent=1 // pred_check
      _
    $region35: #{critic_forward.1} parent=1 // pred_check_branch
      %59 = sbr.rel (0) target = $region37
    $region36: #{critic_forward.1} parent=1 // pred_region
      _
    $region37: #{critic_forward.1} parent=1 // pred_fallthru
      _
    // Predicated region
    $region38: #{critic_forward.1} parent=1 // pred_check
      _
    $region39: #{critic_forward.1} parent=1 // pred_check_branch
      %61 = sbr.rel (0) target = $region41
    $region40: #{critic_forward.1} parent=1 // pred_region
      _
    $region41: #{critic_forward.1} parent=1 // pred_fallthru
      _
    // Predicated region
    $region42: #{critic_forward.1} parent=1 // pred_check
      _
    $region43: #{critic_forward.1} parent=1 // pred_check_branch
      %63 = sbr.rel (0) target = $region45
    $region44: #{critic_forward.1} parent=1 // pred_region
      _
    $region45: #{critic_forward.1} parent=1 // pred_fallthru
      _
    // Predicated region
    $region46: #{critic_forward.1} parent=1 // pred_check
      _
    $region47: #{critic_forward.1} parent=1 // pred_check_branch
      %65 = sbr.rel (0) target = $region49
    $region48: #{critic_forward.1} parent=1 // pred_region
      %66 = dma.done [#allocation5], 9600
    $region49: #{critic_forward.1} parent=1 // pred_fallthru
      _
    // Predicated region
    $region50: #{critic_forward.1} parent=1 // pred_check
      _
    $region51: #{critic_forward.1} parent=1 // pred_check_branch
      %68 = sbr.rel (0) target = $region53
    $region52: #{critic_forward.1} parent=1 // pred_region
      %69 = dma.done [#allocation7], 9600
    $region53: #{critic_forward.1} parent=1 // pred_fallthru
      _
    %v71 = vld [vmem:[%s0] sm:$0xff]
    %v72 = vpack.c.bf16 %v71, %v71
    %v73 = vld [vmem:[%s1] sm:$0xff]
    %v74 = vld [vmem:[%s1 + $0x8] sm:$0xff]
    %v75 = vld [vmem:[%s1 + $0x10] sm:$0xff]
    %v76 = vld [vmem:[%s1 + $0x18] sm:$0xf]
    %v77 = vld [vmem:[%s1 + $0x1c] sm:$0xff]
    %v78 = vld [vmem:[%s1 + $0x24] sm:$0xff]
    %v79 = vld [vmem:[%s1 + $0x2c] sm:$0xff]
    %v80 = vld [vmem:[%s1 + $0x34] sm:$0xf]
    %v81 = vld [vmem:[%s1 + $0x38] sm:$0xff]
    %v82 = vld [vmem:[%s1 + $0x40] sm:$0xff]
    %v83 = vld [vmem:[%s1 + $0x48] sm:$0xff]
    %v84 = vld [vmem:[%s1 + $0x50] sm:$0xf]
    %v85 = vld [vmem:[%s1 + $0x54] sm:$0xff]
    %v86 = vld [vmem:[%s1 + $0x5c] sm:$0xff]
    %v87 = vld [vmem:[%s1 + $0x64] sm:$0xff]
    %v88 = vld [vmem:[%s1 + $0x6c] sm:$0xf]
    %v89 = vld [vmem:[%s2] sm:$0x7f]
    %v91 = vlaneseq
    %v92 = vshrl.u32 %v91, 7
    %v93 = vsub.s32 0, %v92
    %v94 = vrot.slane %v89, %v93
    %v95 = vlaneseq
    %v96 = vshrl.u32 %v95, 7
    %v97 = vsub.s32 1, %v96
    %v98 = vrot.slane %v89, %v97
    %v99 = vlaneseq
    %v100 = vshrl.u32 %v99, 7
    %v101 = vsub.s32 2, %v100
    %v102 = vrot.slane %v89, %v101
    %v103 = vlaneseq
    %v104 = vshrl.u32 %v103, 7
    %v105 = vsub.s32 3, %v104
    %v106 = vrot.slane %v89, %v105
    %v107 = vlaneseq
    %v108 = vshrl.u32 %v107, 7
    %v109 = vsub.s32 4, %v108
    %v110 = vrot.slane %v89, %v109
    %v111 = vlaneseq
    %v112 = vshrl.u32 %v111, 7
    %v113 = vsub.s32 5, %v112
    %v114 = vrot.slane %v89, %v113
    %v115 = vlaneseq
    %v116 = vshrl.u32 %v115, 7
    %v117 = vsub.s32 6, %v116
    %v118 = vrot.slane %v89, %v117
    %v142 = vunpack.c.l.b16 %v73
    %v143 = vunpack.c.h.b16 %v73
    %v144 = vunpack.c.l.b16 %v74
    %v145 = vunpack.c.h.b16 %v74
    %v146 = vunpack.c.l.b16 %v75
    %v147 = vunpack.c.h.b16 %v75
    %v148 = vunpack.c.l.b16 %v76
    %v149 = vunpack.c.l.b16 %v77
    %v150 = vunpack.c.h.b16 %v77
    %v151 = vunpack.c.l.b16 %v78
    %v152 = vunpack.c.h.b16 %v78
    %v153 = vunpack.c.l.b16 %v79
    %v154 = vunpack.c.h.b16 %v79
    %v155 = vunpack.c.l.b16 %v80
    %v156 = vunpack.c.l.b16 %v81
    %v157 = vunpack.c.h.b16 %v81
    %v158 = vunpack.c.l.b16 %v82
    %v159 = vunpack.c.h.b16 %v82
    %v160 = vunpack.c.l.b16 %v83
    %v161 = vunpack.c.h.b16 %v83
    %v162 = vunpack.c.l.b16 %v84
    %v163 = vunpack.c.l.b16 %v85
    %v164 = vunpack.c.h.b16 %v85
    %v165 = vunpack.c.l.b16 %v86
    %v166 = vunpack.c.h.b16 %v86
    %v167 = vunpack.c.l.b16 %v87
    %v168 = vunpack.c.h.b16 %v87
    %v169 = vunpack.c.l.b16 %v88
    %v170 = vpack.c.b16 %v149, %v142
    %v171 = vpack.c.b16 %v150, %v143
    %v172 = vpack.c.b16 %v151, %v144
    %v173 = vpack.c.b16 %v152, %v145
    %v174 = vpack.c.b16 %v153, %v146
    %v175 = vpack.c.b16 %v154, %v147
    %v176 = vpack.c.b16 %v155, %v148
    %v177 = vpack.c.b16 %v163, %v156
    %v178 = vpack.c.b16 %v164, %v157
    %v179 = vpack.c.b16 %v165, %v158
    %v180 = vpack.c.b16 %v166, %v159
    %v181 = vpack.c.b16 %v167, %v160
    %v182 = vpack.c.b16 %v168, %v161
    %v183 = vpack.c.b16 %v169, %v162
    %vm198 = vcmask 261120
    %v200 = vsel %vm198, %v72, 0
    %202 = vmatprep.subr.bf16.mxu0 %v171
    %203 = vmatpush1.bf16.msra.mxu0 %v170
    %204 = vmatprep.subr.bf16.mxu0 %v178
    %205 = vmatpush1.bf16.msra.mxu0 %v177
    %206 = vmatprep.subr.bf16.mxu0 0
    %207 = vmatpush1.bf16.msra.mxu0 0
    %208 = vmatprep.subr.bf16.mxu0 0
    %209 = vmatpush1.bf16.msra.mxu0 0
    %210 = vmatprep.subr.bf16.mxu0 0
    %211 = vmatpush1.bf16.msra.mxu0 0
    %212 = vmatprep.subr.bf16.mxu0 0
    %213 = vmatpush1.bf16.msra.mxu0 0
    %214 = vmatprep.subr.bf16.mxu0 0
    %215 = vmatpush1.bf16.msra.mxu0 0
    %216 = vmatprep.subr.bf16.mxu0 0
    %217 = vmatpush1.bf16.msra.mxu0 0
    %218 = vmatprep.subr.bf16.mxu0 0
    %219 = vmatpush1.bf16.msra.mxu0 0
    %220 = vmatprep.subr.bf16.mxu0 0
    %221 = vmatpush1.bf16.msra.mxu0 0
    %222 = vmatprep.subr.bf16.mxu0 0
    %223 = vmatpush1.bf16.msra.mxu0 0
    %224 = vmatprep.subr.bf16.mxu0 0
    %225 = vmatpush1.bf16.msra.mxu0 0
    %226 = vmatprep.subr.bf16.mxu0 0
    %227 = vmatpush1.bf16.msra.mxu0 0
    %228 = vmatprep.subr.bf16.mxu0 0
    %229 = vmatpush1.bf16.msra.mxu0 0
    %230 = vmatprep.subr.bf16.mxu0 0
    %231 = vmatpush1.bf16.msra.mxu0 0
    %232 = vmatprep.subr.bf16.mxu0 0
    %233 = vmatpush1.bf16.msra.mxu0 0
    %234 = vmatprep.mubr.bf16.mxu0 0
    %235 = vmatmul.mubr.bf16.gmra.mrb[0].mxu0 %v200
    %v236 = vpop.f32.mrb[0].mxu0
    %v237 = vadd.f32 %v94, %v236
    %v238 = vpop.f32.mrb[0].mxu0
    %v239 = vadd.f32 %v98, %v238
    %v240 = vpop.f32.mrb[0].mxu0
    %v241 = vpop.f32.mrb[0].mxu0
    %242 = vdwg.mxu0
    %243 = vmatprep.subr.bf16.mxu0 %v173
    %244 = vmatpush1.bf16.msra.mxu0 %v172
    %245 = vmatprep.subr.bf16.mxu0 %v180
    %246 = vmatpush1.bf16.msra.mxu0 %v179
    %247 = vmatprep.subr.bf16.mxu0 0
    %248 = vmatpush1.bf16.msra.mxu0 0
    %249 = vmatprep.subr.bf16.mxu0 0
    %250 = vmatpush1.bf16.msra.mxu0 0
    %251 = vmatprep.subr.bf16.mxu0 0
    %252 = vmatpush1.bf16.msra.mxu0 0
    %253 = vmatprep.subr.bf16.mxu0 0
    %254 = vmatpush1.bf16.msra.mxu0 0
    %255 = vmatprep.subr.bf16.mxu0 0
    %256 = vmatpush1.bf16.msra.mxu0 0
    %257 = vmatprep.subr.bf16.mxu0 0
    %258 = vmatpush1.bf16.msra.mxu0 0
    %259 = vmatprep.subr.bf16.mxu0 0
    %260 = vmatpush1.bf16.msra.mxu0 0
    %261 = vmatprep.subr.bf16.mxu0 0
    %262 = vmatpush1.bf16.msra.mxu0 0
    %263 = vmatprep.subr.bf16.mxu0 0
    %264 = vmatpush1.bf16.msra.mxu0 0
    %265 = vmatprep.subr.bf16.mxu0 0
    %266 = vmatpush1.bf16.msra.mxu0 0
    %267 = vmatprep.subr.bf16.mxu0 0
    %268 = vmatpush1.bf16.msra.mxu0 0
    %269 = vmatprep.subr.bf16.mxu0 0
    %270 = vmatpush1.bf16.msra.mxu0 0
    %271 = vmatprep.subr.bf16.mxu0 0
    %272 = vmatpush1.bf16.msra.mxu0 0
    %273 = vmatprep.subr.bf16.mxu0 0
    %274 = vmatpush1.bf16.msra.mxu0 0
    %275 = vmatprep.mubr.bf16.mxu0 0
    %276 = vmatmul.mubr.bf16.gmra.mrb[0].mxu0 %v200
    %v277 = vpop.f32.mrb[0].mxu0
    %v278 = vadd.f32 %v102, %v277
    %v279 = vpop.f32.mrb[0].mxu0
    %v280 = vadd.f32 %v106, %v279
    %v281 = vpop.f32.mrb[0].mxu0
    %v282 = vpop.f32.mrb[0].mxu0
    %283 = vdwg.mxu0
    %284 = vmatprep.subr.bf16.mxu0 %v175
    %285 = vmatpush1.bf16.msra.mxu0 %v174
    %286 = vmatprep.subr.bf16.mxu0 %v182
    %287 = vmatpush1.bf16.msra.mxu0 %v181
    %288 = vmatprep.subr.bf16.mxu0 0
    %289 = vmatpush1.bf16.msra.mxu0 0
    %290 = vmatprep.subr.bf16.mxu0 0
    %291 = vmatpush1.bf16.msra.mxu0 0
    %292 = vmatprep.subr.bf16.mxu0 0
    %293 = vmatpush1.bf16.msra.mxu0 0
    %294 = vmatprep.subr.bf16.mxu0 0
    %295 = vmatpush1.bf16.msra.mxu0 0
    %296 = vmatprep.subr.bf16.mxu0 0
    %297 = vmatpush1.bf16.msra.mxu0 0
    %298 = vmatprep.subr.bf16.mxu0 0
    %299 = vmatpush1.bf16.msra.mxu0 0
    %300 = vmatprep.subr.bf16.mxu0 0
    %301 = vmatpush1.bf16.msra.mxu0 0
    %302 = vmatprep.subr.bf16.mxu0 0
    %303 = vmatpush1.bf16.msra.mxu0 0
    %304 = vmatprep.subr.bf16.mxu0 0
    %305 = vmatpush1.bf16.msra.mxu0 0
    %306 = vmatprep.subr.bf16.mxu0 0
    %307 = vmatpush1.bf16.msra.mxu0 0
    %308 = vmatprep.subr.bf16.mxu0 0
    %309 = vmatpush1.bf16.msra.mxu0 0
    %310 = vmatprep.subr.bf16.mxu0 0
    %311 = vmatpush1.bf16.msra.mxu0 0
    %312 = vmatprep.subr.bf16.mxu0 0
    %313 = vmatpush1.bf16.msra.mxu0 0
    %314 = vmatprep.subr.bf16.mxu0 0
    %315 = vmatpush1.bf16.msra.mxu0 0
    %316 = vmatprep.mubr.bf16.mxu0 0
    %317 = vmatmul.mubr.bf16.gmra.mrb[0].mxu0 %v200
    %v318 = vpop.f32.mrb[0].mxu0
    %v319 = vadd.f32 %v110, %v318
    %v320 = vpop.f32.mrb[0].mxu0
    %v321 = vadd.f32 %v114, %v320
    %v322 = vpop.f32.mrb[0].mxu0
    %v323 = vpop.f32.mrb[0].mxu0
    %324 = vdwg.mxu0
    %325 = vmatprep.subr.bf16.mxu0 0
    %326 = vmatpush1.bf16.msra.mxu0 %v176
    %327 = vmatprep.subr.bf16.mxu0 0
    %328 = vmatpush1.bf16.msra.mxu0 %v183
    %329 = vmatprep.subr.bf16.mxu0 0
    %330 = vmatpush1.bf16.msra.mxu0 0
    %331 = vmatprep.subr.bf16.mxu0 0
    %332 = vmatpush1.bf16.msra.mxu0 0
    %333 = vmatprep.subr.bf16.mxu0 0
    %334 = vmatpush1.bf16.msra.mxu0 0
    %335 = vmatprep.subr.bf16.mxu0 0
    %336 = vmatpush1.bf16.msra.mxu0 0
    %337 = vmatprep.subr.bf16.mxu0 0
    %338 = vmatpush1.bf16.msra.mxu0 0
    %339 = vmatprep.subr.bf16.mxu0 0
    %340 = vmatpush1.bf16.msra.mxu0 0
    %341 = vmatprep.subr.bf16.mxu0 0
    %342 = vmatpush1.bf16.msra.mxu0 0
    %343 = vmatprep.subr.bf16.mxu0 0
    %344 = vmatpush1.bf16.msra.mxu0 0
    %345 = vmatprep.subr.bf16.mxu0 0
    %346 = vmatpush1.bf16.msra.mxu0 0
    %347 = vmatprep.subr.bf16.mxu0 0
    %348 = vmatpush1.bf16.msra.mxu0 0
    %349 = vmatprep.subr.bf16.mxu0 0
    %350 = vmatpush1.bf16.msra.mxu0 0
    %351 = vmatprep.subr.bf16.mxu0 0
    %352 = vmatpush1.bf16.msra.mxu0 0
    %353 = vmatprep.subr.bf16.mxu0 0
    %354 = vmatpush1.bf16.msra.mxu0 0
    %355 = vmatprep.subr.bf16.mxu0 0
    %356 = vmatpush1.bf16.msra.mxu0 0
    %357 = vmatprep.mubr.bf16.mxu0 0
    %358 = vmatmul.mubr.bf16.gmra.mrb[0].mxu0 %v200
    %v359 = vpop.f32.mrb[0].mxu0
    %v360 = vadd.f32 %v118, %v359
    %v361 = vpop.f32.mrb[0].mxu0
    %v362 = vpop.f32.mrb[0].mxu0
    %v363 = vpop.f32.mrb[0].mxu0
    %364 = vdwg.mxu0
    %vm365 = vcmp.gt.f32.partialorder %v237, 0.0
    %vm366 = vcmp.gt.f32.partialorder %v239, 0.0
    %vm367 = vcmp.gt.f32.partialorder %v278, 0.0
    %vm368 = vcmp.gt.f32.partialorder %v280, 0.0
    %vm369 = vcmp.gt.f32.partialorder %v319, 0.0
    %vm370 = vcmp.gt.f32.partialorder %v321, 0.0
    %vm371 = vcmp.gt.f32.partialorder %v360, 0.0
    %v372 = vmul.f32 %v237, 0.01
    %v373 = vmul.f32 %v239, 0.01
    %v374 = vmul.f32 %v278, 0.01
    %v375 = vmul.f32 %v280, 0.01
    %v376 = vmul.f32 %v319, 0.01
    %v377 = vmul.f32 %v321, 0.01
    %v378 = vmul.f32 %v360, 0.01
    %v379 = vsel %vm365, %v237, %v372
    %v380 = vsel %vm366, %v239, %v373
    %v381 = vsel %vm367, %v278, %v374
    %v382 = vsel %vm368, %v280, %v375
    %v383 = vsel %vm369, %v319, %v376
    %v384 = vsel %vm370, %v321, %v377
    %v385 = vsel %vm371, %v360, %v378
    %v386 = vpack.c.bf16 %v379, %v379
    %v387 = vpack.c.bf16 %v380, %v380
    %v388 = vpack.c.bf16 %v381, %v381
    %v389 = vpack.c.bf16 %v382, %v382
    %v390 = vpack.c.bf16 %v383, %v383
    %v391 = vpack.c.bf16 %v384, %v384
    %v392 = vpack.c.bf16 %v385, %v385
    %v393 = vld [vmem:[#allocation4] sm:$0xff]
    %v394 = vld [vmem:[#allocation4 + $0x8] sm:$0xf]
    %v395 = vld [vmem:[#allocation4 + $0xc] sm:$0xff]
    %v396 = vld [vmem:[#allocation4 + $0x14] sm:$0xf]
    %v397 = vld [vmem:[#allocation4 + $0x18] sm:$0xff]
    %v398 = vld [vmem:[#allocation4 + $0x20] sm:$0xf]
    %v399 = vld [vmem:[#allocation4 + $0x24] sm:$0xff]
    %v400 = vld [vmem:[#allocation4 + $0x2c] sm:$0xf]
    %v401 = vld [vmem:[#allocation4 + $0x30] sm:$0xff]
    %v402 = vld [vmem:[#allocation4 + $0x38] sm:$0xf]
    %v403 = vld [vmem:[#allocation4 + $0x3c] sm:$0xff]
    %v404 = vld [vmem:[#allocation4 + $0x44] sm:$0xf]
    %v405 = vld [vmem:[#allocation4 + $0x48] sm:$0xff]
    %v406 = vld [vmem:[#allocation4 + $0x50] sm:$0xf]
    %v407 = vld [vmem:[#allocation4 + $0x54] sm:$0xff]
    %v408 = vld [vmem:[#allocation4 + $0x5c] sm:$0xf]
    %v409 = vld [vmem:[#allocation4 + $0x60] sm:$0xff]
    %v410 = vld [vmem:[#allocation4 + $0x68] sm:$0xf]
    %v411 = vld [vmem:[#allocation4 + $0x6c] sm:$0xff]
    %v412 = vld [vmem:[#allocation4 + $0x74] sm:$0xf]
    %v413 = vld [vmem:[#allocation4 + $0x78] sm:$0xff]
    %v414 = vld [vmem:[#allocation4 + $0x80] sm:$0xf]
    %v415 = vld [vmem:[#allocation4 + $0x84] sm:$0xff]
    %v416 = vld [vmem:[#allocation4 + $0x8c] sm:$0xf]
    %v417 = vld [vmem:[#allocation4 + $0x90] sm:$0xff]
    %v418 = vld [vmem:[#allocation4 + $0x98] sm:$0xf]
    %v419 = vld [vmem:[#allocation4 + $0x9c] sm:$0xff]
    %v420 = vld [vmem:[#allocation4 + $0xa4] sm:$0xf]
    %v421 = vld [vmem:[#allocation4 + $0xa8] sm:$0xff]
    %v422 = vld [vmem:[#allocation4 + $0xb0] sm:$0xf]
    %v423 = vld [vmem:[#allocation4 + $0xb4] sm:$0xff]
    %v424 = vld [vmem:[#allocation4 + $0xbc] sm:$0xf]
    %v425 = vld [vmem:[#allocation4 + $0xc0] sm:$0xff]
    %v426 = vld [vmem:[#allocation4 + $0xc8] sm:$0xf]
    %v427 = vld [vmem:[#allocation4 + $0xcc] sm:$0xff]
    %v428 = vld [vmem:[#allocation4 + $0xd4] sm:$0xf]
    %v429 = vld [vmem:[#allocation4 + $0xd8] sm:$0xff]
    %v430 = vld [vmem:[#allocation4 + $0xe0] sm:$0xf]
    %v431 = vld [vmem:[#allocation4 + $0xe4] sm:$0xff]
    %v432 = vld [vmem:[#allocation4 + $0xec] sm:$0xf]
    %v433 = vld [vmem:[#allocation4 + $0xf0] sm:$0xff]
    %v434 = vld [vmem:[#allocation4 + $0xf8] sm:$0xf]
    %v435 = vld [vmem:[#allocation4 + $0xfc] sm:$0xff]
    %v436 = vld [vmem:[#allocation4 + $0x104] sm:$0xf]
    %v437 = vld [vmem:[#allocation4 + $0x108] sm:$0xff]
    %v438 = vld [vmem:[#allocation4 + $0x110] sm:$0xf]
    %v439 = vld [vmem:[#allocation4 + $0x114] sm:$0xff]
    %v440 = vld [vmem:[#allocation4 + $0x11c] sm:$0xf]
    %v441 = vld [vmem:[#allocation4 + $0x120] sm:$0xff]
    %v442 = vld [vmem:[#allocation4 + $0x128] sm:$0xf]
    %v443 = vld [vmem:[#allocation4 + $0x12c] sm:$0xff]
    %v444 = vld [vmem:[#allocation4 + $0x134] sm:$0xf]
    %v445 = vld [vmem:[#allocation4 + $0x138] sm:$0xff]
    %v446 = vld [vmem:[#allocation4 + $0x140] sm:$0xf]
    %v447 = vld [vmem:[#allocation4 + $0x144] sm:$0xff]
    %v448 = vld [vmem:[#allocation4 + $0x14c] sm:$0xf]
    %v449 = vld [vmem:[#allocation4 + $0x150] sm:$0xff]
    %v450 = vld [vmem:[#allocation4 + $0x158] sm:$0xf]
    %v451 = vld [vmem:[#allocation4 + $0x15c] sm:$0xff]
    %v452 = vld [vmem:[#allocation4 + $0x164] sm:$0xf]
    %v453 = vld [vmem:[#allocation4 + $0x168] sm:$0xff]
    %v454 = vld [vmem:[#allocation4 + $0x170] sm:$0xf]
    %v455 = vld [vmem:[#allocation4 + $0x174] sm:$0xff]
    %v456 = vld [vmem:[#allocation4 + $0x17c] sm:$0xf]
    %v457 = vld [vmem:[#allocation4 + $0x180] sm:$0xff]
    %v458 = vld [vmem:[#allocation4 + $0x188] sm:$0xf]
    %v459 = vld [vmem:[#allocation4 + $0x18c] sm:$0xff]
    %v460 = vld [vmem:[#allocation4 + $0x194] sm:$0xf]
    %v461 = vld [vmem:[#allocation4 + $0x198] sm:$0xff]
    %v462 = vld [vmem:[#allocation4 + $0x1a0] sm:$0xf]
    %v463 = vld [vmem:[#allocation4 + $0x1a4] sm:$0xff]
    %v464 = vld [vmem:[#allocation4 + $0x1ac] sm:$0xf]
    %v465 = vld [vmem:[#allocation4 + $0x1b0] sm:$0xff]
    %v466 = vld [vmem:[#allocation4 + $0x1b8] sm:$0xf]
    %v467 = vld [vmem:[#allocation4 + $0x1bc] sm:$0xff]
    %v468 = vld [vmem:[#allocation4 + $0x1c4] sm:$0xf]
    %v469 = vld [vmem:[#allocation4 + $0x1c8] sm:$0xff]
    %v470 = vld [vmem:[#allocation4 + $0x1d0] sm:$0xf]
    %v471 = vld [vmem:[#allocation4 + $0x1d4] sm:$0xff]
    %v472 = vld [vmem:[#allocation4 + $0x1dc] sm:$0xf]
    %v473 = vld [vmem:[#allocation4 + $0x1e0] sm:$0xff]
    %v474 = vld [vmem:[#allocation4 + $0x1e8] sm:$0xf]
    %v475 = vld [vmem:[#allocation4 + $0x1ec] sm:$0xff]
    %v476 = vld [vmem:[#allocation4 + $0x1f4] sm:$0xf]
    %v477 = vld [vmem:[#allocation4 + $0x1f8] sm:$0xff]
    %v478 = vld [vmem:[#allocation4 + $0x200] sm:$0xf]
    %v479 = vld [vmem:[#allocation4 + $0x204] sm:$0xff]
    %v480 = vld [vmem:[#allocation4 + $0x20c] sm:$0xf]
    %v481 = vld [vmem:[#allocation4 + $0x210] sm:$0xff]
    %v482 = vld [vmem:[#allocation4 + $0x218] sm:$0xf]
    %v483 = vld [vmem:[#allocation4 + $0x21c] sm:$0xff]
    %v484 = vld [vmem:[#allocation4 + $0x224] sm:$0xf]
    %v485 = vld [vmem:[#allocation4 + $0x228] sm:$0xff]
    %v486 = vld [vmem:[#allocation4 + $0x230] sm:$0xf]
    %v487 = vld [vmem:[#allocation4 + $0x234] sm:$0xff]
    %v488 = vld [vmem:[#allocation4 + $0x23c] sm:$0xf]
    %v489 = vld [vmem:[#allocation4 + $0x240] sm:$0xff]
    %v490 = vld [vmem:[#allocation4 + $0x248] sm:$0xf]
    %v491 = vld [vmem:[#allocation4 + $0x24c] sm:$0xff]
    %v492 = vld [vmem:[#allocation4 + $0x254] sm:$0xf]
    %v493 = vld [vmem:[%s4] sm:$0x7]
    %v495 = vlaneseq
    %v496 = vshrl.u32 %v495, 7
    %v497 = vsub.s32 0, %v496
    %v498 = vrot.slane %v493, %v497
    %v499 = vlaneseq
    %v500 = vshrl.u32 %v499, 7
    %v501 = vsub.s32 1, %v500
    %v502 = vrot.slane %v493, %v501
    %v503 = vlaneseq
    %v504 = vshrl.u32 %v503, 7
    %v505 = vsub.s32 2, %v504
    %v506 = vrot.slane %v493, %v505
    %v610 = vunpack.c.l.b16 %v393
    %v611 = vunpack.c.h.b16 %v393
    %v612 = vunpack.c.l.b16 %v394
    %v613 = vunpack.c.l.b16 %v395
    %v614 = vunpack.c.h.b16 %v395
    %v615 = vunpack.c.l.b16 %v396
    %v616 = vunpack.c.l.b16 %v397
    %v617 = vunpack.c.h.b16 %v397
    %v618 = vunpack.c.l.b16 %v398
    %v619 = vunpack.c.l.b16 %v399
    %v620 = vunpack.c.h.b16 %v399
    %v621 = vunpack.c.l.b16 %v400
    %v622 = vunpack.c.l.b16 %v401
    %v623 = vunpack.c.h.b16 %v401
    %v624 = vunpack.c.l.b16 %v402
    %v625 = vunpack.c.l.b16 %v403
    %v626 = vunpack.c.h.b16 %v403
    %v627 = vunpack.c.l.b16 %v404
    %v628 = vunpack.c.l.b16 %v405
    %v629 = vunpack.c.h.b16 %v405
    %v630 = vunpack.c.l.b16 %v406
    %v631 = vunpack.c.l.b16 %v407
    %v632 = vunpack.c.h.b16 %v407
    %v633 = vunpack.c.l.b16 %v408
    %v634 = vunpack.c.l.b16 %v409
    %v635 = vunpack.c.h.b16 %v409
    %v636 = vunpack.c.l.b16 %v410
    %v637 = vunpack.c.l.b16 %v411
    %v638 = vunpack.c.h.b16 %v411
    %v639 = vunpack.c.l.b16 %v412
    %v640 = vunpack.c.l.b16 %v413
    %v641 = vunpack.c.h.b16 %v413
    %v642 = vunpack.c.l.b16 %v414
    %v643 = vunpack.c.l.b16 %v415
    %v644 = vunpack.c.h.b16 %v415
    %v645 = vunpack.c.l.b16 %v416
    %v646 = vunpack.c.l.b16 %v417
    %v647 = vunpack.c.h.b16 %v417
    %v648 = vunpack.c.l.b16 %v418
    %v649 = vunpack.c.l.b16 %v419
    %v650 = vunpack.c.h.b16 %v419
    %v651 = vunpack.c.l.b16 %v420
    %v652 = vunpack.c.l.b16 %v421
    %v653 = vunpack.c.h.b16 %v421
    %v654 = vunpack.c.l.b16 %v422
    %v655 = vunpack.c.l.b16 %v423
    %v656 = vunpack.c.h.b16 %v423
    %v657 = vunpack.c.l.b16 %v424
    %v658 = vunpack.c.l.b16 %v425
    %v659 = vunpack.c.h.b16 %v425
    %v660 = vunpack.c.l.b16 %v426
    %v661 = vunpack.c.l.b16 %v427
    %v662 = vunpack.c.h.b16 %v427
    %v663 = vunpack.c.l.b16 %v428
    %v664 = vunpack.c.l.b16 %v429
    %v665 = vunpack.c.h.b16 %v429
    %v666 = vunpack.c.l.b16 %v430
    %v667 = vunpack.c.l.b16 %v431
    %v668 = vunpack.c.h.b16 %v431
    %v669 = vunpack.c.l.b16 %v432
    %v670 = vunpack.c.l.b16 %v433
    %v671 = vunpack.c.h.b16 %v433
    %v672 = vunpack.c.l.b16 %v434
    %v673 = vunpack.c.l.b16 %v435
    %v674 = vunpack.c.h.b16 %v435
    %v675 = vunpack.c.l.b16 %v436
    %v676 = vunpack.c.l.b16 %v437
    %v677 = vunpack.c.h.b16 %v437
    %v678 = vunpack.c.l.b16 %v438
    %v679 = vunpack.c.l.b16 %v439
    %v680 = vunpack.c.h.b16 %v439
    %v681 = vunpack.c.l.b16 %v440
    %v682 = vunpack.c.l.b16 %v441
    %v683 = vunpack.c.h.b16 %v441
    %v684 = vunpack.c.l.b16 %v442
    %v685 = vunpack.c.l.b16 %v443
    %v686 = vunpack.c.h.b16 %v443
    %v687 = vunpack.c.l.b16 %v444
    %v688 = vunpack.c.l.b16 %v445
    %v689 = vunpack.c.h.b16 %v445
    %v690 = vunpack.c.l.b16 %v446
    %v691 = vunpack.c.l.b16 %v447
    %v692 = vunpack.c.h.b16 %v447
    %v693 = vunpack.c.l.b16 %v448
    %v694 = vunpack.c.l.b16 %v449
    %v695 = vunpack.c.h.b16 %v449
    %v696 = vunpack.c.l.b16 %v450
    %v697 = vunpack.c.l.b16 %v451
    %v698 = vunpack.c.h.b16 %v451
    %v699 = vunpack.c.l.b16 %v452
    %v700 = vunpack.c.l.b16 %v453
    %v701 = vunpack.c.h.b16 %v453
    %v702 = vunpack.c.l.b16 %v454
    %v703 = vunpack.c.l.b16 %v455
    %v704 = vunpack.c.h.b16 %v455
    %v705 = vunpack.c.l.b16 %v456
    %v706 = vunpack.c.l.b16 %v457
    %v707 = vunpack.c.h.b16 %v457
    %v708 = vunpack.c.l.b16 %v458
    %v709 = vunpack.c.l.b16 %v459
    %v710 = vunpack.c.h.b16 %v459
    %v711 = vunpack.c.l.b16 %v460
    %v712 = vunpack.c.l.b16 %v461
    %v713 = vunpack.c.h.b16 %v461
    %v714 = vunpack.c.l.b16 %v462
    %v715 = vunpack.c.l.b16 %v463
    %v716 = vunpack.c.h.b16 %v463
    %v717 = vunpack.c.l.b16 %v464
    %v718 = vunpack.c.l.b16 %v465
    %v719 = vunpack.c.h.b16 %v465
    %v720 = vunpack.c.l.b16 %v466
    %v721 = vunpack.c.l.b16 %v467
    %v722 = vunpack.c.h.b16 %v467
    %v723 = vunpack.c.l.b16 %v468
    %v724 = vunpack.c.l.b16 %v469
    %v725 = vunpack.c.h.b16 %v469
    %v726 = vunpack.c.l.b16 %v470
    %v727 = vunpack.c.l.b16 %v471
    %v728 = vunpack.c.h.b16 %v471
    %v729 = vunpack.c.l.b16 %v472
    %v730 = vunpack.c.l.b16 %v473
    %v731 = vunpack.c.h.b16 %v473
    %v732 = vunpack.c.l.b16 %v474
    %v733 = vunpack.c.l.b16 %v475
    %v734 = vunpack.c.h.b16 %v475
    %v735 = vunpack.c.l.b16 %v476
    %v736 = vunpack.c.l.b16 %v477
    %v737 = vunpack.c.h.b16 %v477
    %v738 = vunpack.c.l.b16 %v478
    %v739 = vunpack.c.l.b16 %v479
    %v740 = vunpack.c.h.b16 %v479
    %v741 = vunpack.c.l.b16 %v480
    %v742 = vunpack.c.l.b16 %v481
    %v743 = vunpack.c.h.b16 %v481
    %v744 = vunpack.c.l.b16 %v482
    %v745 = vunpack.c.l.b16 %v483
    %v746 = vunpack.c.h.b16 %v483
    %v747 = vunpack.c.l.b16 %v484
    %v748 = vunpack.c.l.b16 %v485
    %v749 = vunpack.c.h.b16 %v485
    %v750 = vunpack.c.l.b16 %v486
    %v751 = vunpack.c.l.b16 %v487
    %v752 = vunpack.c.h.b16 %v487
    %v753 = vunpack.c.l.b16 %v488
    %v754 = vunpack.c.l.b16 %v489
    %v755 = vunpack.c.h.b16 %v489
    %v756 = vunpack.c.l.b16 %v490
    %v757 = vunpack.c.l.b16 %v491
    %v758 = vunpack.c.h.b16 %v491
    %v759 = vunpack.c.l.b16 %v492
    %v760 = vpack.c.b16 %v613, %v610
    %v761 = vpack.c.b16 %v614, %v611
    %v762 = vpack.c.b16 %v615, %v612
    %v763 = vpack.c.b16 %v619, %v616
    %v764 = vpack.c.b16 %v620, %v617
    %v765 = vpack.c.b16 %v621, %v618
    %v766 = vpack.c.b16 %v625, %v622
    %v767 = vpack.c.b16 %v626, %v623
    %v768 = vpack.c.b16 %v627, %v624
    %v769 = vpack.c.b16 %v631, %v628
    %v770 = vpack.c.b16 %v632, %v629
    %v771 = vpack.c.b16 %v633, %v630
    %v772 = vpack.c.b16 %v637, %v634
    %v773 = vpack.c.b16 %v638, %v635
    %v774 = vpack.c.b16 %v639, %v636
    %v775 = vpack.c.b16 %v643, %v640
    %v776 = vpack.c.b16 %v644, %v641
    %v777 = vpack.c.b16 %v645, %v642
    %v778 = vpack.c.b16 %v649, %v646
    %v779 = vpack.c.b16 %v650, %v647
    %v780 = vpack.c.b16 %v651, %v648
    %v781 = vpack.c.b16 %v655, %v652
    %v782 = vpack.c.b16 %v656, %v653
    %v783 = vpack.c.b16 %v657, %v654
    %v784 = vpack.c.b16 %v661, %v658
    %v785 = vpack.c.b16 %v662, %v659
    %v786 = vpack.c.b16 %v663, %v660
    %v787 = vpack.c.b16 %v667, %v664
    %v788 = vpack.c.b16 %v668, %v665
    %v789 = vpack.c.b16 %v669, %v666
    %v790 = vpack.c.b16 %v673, %v670
    %v791 = vpack.c.b16 %v674, %v671
    %v792 = vpack.c.b16 %v675, %v672
    %v793 = vpack.c.b16 %v679, %v676
    %v794 = vpack.c.b16 %v680, %v677
    %v795 = vpack.c.b16 %v681, %v678
    %v796 = vpack.c.b16 %v685, %v682
    %v797 = vpack.c.b16 %v686, %v683
    %v798 = vpack.c.b16 %v687, %v684
    %v799 = vpack.c.b16 %v691, %v688
    %v800 = vpack.c.b16 %v692, %v689
    %v801 = vpack.c.b16 %v693, %v690
    %v802 = vpack.c.b16 %v697, %v694
    %v803 = vpack.c.b16 %v698, %v695
    %v804 = vpack.c.b16 %v699, %v696
    %v805 = vpack.c.b16 %v703, %v700
    %v806 = vpack.c.b16 %v704, %v701
    %v807 = vpack.c.b16 %v705, %v702
    %v808 = vpack.c.b16 %v709, %v706
    %v809 = vpack.c.b16 %v710, %v707
    %v810 = vpack.c.b16 %v711, %v708
    %v811 = vpack.c.b16 %v715, %v712
    %v812 = vpack.c.b16 %v716, %v713
    %v813 = vpack.c.b16 %v717, %v714
    %v814 = vpack.c.b16 %v721, %v718
    %v815 = vpack.c.b16 %v722, %v719
    %v816 = vpack.c.b16 %v723, %v720
    %v817 = vpack.c.b16 %v727, %v724
    %v818 = vpack.c.b16 %v728, %v725
    %v819 = vpack.c.b16 %v729, %v726
    %v820 = vpack.c.b16 %v733, %v730
    %v821 = vpack.c.b16 %v734, %v731
    %v822 = vpack.c.b16 %v735, %v732
    %v823 = vpack.c.b16 %v739, %v736
    %v824 = vpack.c.b16 %v740, %v737
    %v825 = vpack.c.b16 %v741, %v738
    %v826 = vpack.c.b16 %v745, %v742
    %v827 = vpack.c.b16 %v746, %v743
    %v828 = vpack.c.b16 %v747, %v744
    %v829 = vpack.c.b16 %v751, %v748
    %v830 = vpack.c.b16 %v752, %v749
    %v831 = vpack.c.b16 %v753, %v750
    %v832 = vpack.c.b16 %v757, %v754
    %v833 = vpack.c.b16 %v758, %v755
    %v834 = vpack.c.b16 %v759, %v756
    %vm910 = vcmask 130048
    %v912 = vsel %vm910, %v389, 0
    %914 = vmatprep.subr.bf16.mxu0 %v761
    %915 = vmatpush1.bf16.msra.mxu0 %v760
    %916 = vmatprep.subr.bf16.mxu0 %v764
    %917 = vmatpush1.bf16.msra.mxu0 %v763
    %918 = vmatprep.subr.bf16.mxu0 %v767
    %919 = vmatpush1.bf16.msra.mxu0 %v766
    %920 = vmatprep.subr.bf16.mxu0 %v770
    %921 = vmatpush1.bf16.msra.mxu0 %v769
    %922 = vmatprep.subr.bf16.mxu0 %v773
    %923 = vmatpush1.bf16.msra.mxu0 %v772
    %924 = vmatprep.subr.bf16.mxu0 %v776
    %925 = vmatpush1.bf16.msra.mxu0 %v775
    %926 = vmatprep.subr.bf16.mxu0 %v779
    %927 = vmatpush1.bf16.msra.mxu0 %v778
    %928 = vmatprep.subr.bf16.mxu0 %v782
    %929 = vmatpush1.bf16.msra.mxu0 %v781
    %930 = vmatprep.subr.bf16.mxu0 %v785
    %931 = vmatpush1.bf16.msra.mxu0 %v784
    %932 = vmatprep.subr.bf16.mxu0 %v788
    %933 = vmatpush1.bf16.msra.mxu0 %v787
    %934 = vmatprep.subr.bf16.mxu0 %v791
    %935 = vmatpush1.bf16.msra.mxu0 %v790
    %936 = vmatprep.subr.bf16.mxu0 %v794
    %937 = vmatpush1.bf16.msra.mxu0 %v793
    %938 = vmatprep.subr.bf16.mxu0 %v797
    %939 = vmatpush1.bf16.msra.mxu0 %v796
    %940 = vmatprep.subr.bf16.mxu0 %v800
    %941 = vmatpush1.bf16.msra.mxu0 %v799
    %942 = vmatprep.subr.bf16.mxu0 %v803
    %943 = vmatpush1.bf16.msra.mxu0 %v802
    %944 = vmatprep.subr.bf16.mxu0 %v806
    %945 = vmatpush1.bf16.msra.mxu0 %v805
    %946 = vmatprep.mubr.bf16.mxu0 %v387
    %947 = vmatmul.mubr.bf16.gmra.mrb[0].mxu0 %v386
    %v948 = vpop.f32.mrb[0].mxu0
    %v949 = vadd.f32 %v498, %v948
    %v950 = vpop.f32.mrb[0].mxu0
    %v951 = vadd.f32 %v502, %v950
    %v952 = vpop.f32.mrb[0].mxu0
    %v953 = vpop.f32.mrb[0].mxu0
    %954 = vdwg.mxu0
    %955 = vmatprep.subr.bf16.mxu0 %v809
    %956 = vmatpush1.bf16.msra.mxu0 %v808
    %957 = vmatprep.subr.bf16.mxu0 %v812
    %958 = vmatpush1.bf16.msra.mxu0 %v811
    %959 = vmatprep.subr.bf16.mxu0 %v815
    %960 = vmatpush1.bf16.msra.mxu0 %v814
    %961 = vmatprep.subr.bf16.mxu0 %v818
    %962 = vmatpush1.bf16.msra.mxu0 %v817
    %963 = vmatprep.subr.bf16.mxu0 %v821
    %964 = vmatpush1.bf16.msra.mxu0 %v820
    %965 = vmatprep.subr.bf16.mxu0 %v824
    %966 = vmatpush1.bf16.msra.mxu0 %v823
    %967 = vmatprep.subr.bf16.mxu0 %v827
    %968 = vmatpush1.bf16.msra.mxu0 %v826
    %969 = vmatprep.subr.bf16.mxu0 %v830
    %970 = vmatpush1.bf16.msra.mxu0 %v829
    %971 = vmatprep.subr.bf16.mxu0 %v833
    %972 = vmatpush1.bf16.msra.mxu0 %v832
    %973 = vmatprep.subr.bf16.mxu0 0
    %974 = vmatpush1.bf16.msra.mxu0 0
    %975 = vmatprep.subr.bf16.mxu0 0
    %976 = vmatpush1.bf16.msra.mxu0 0
    %977 = vmatprep.subr.bf16.mxu0 0
    %978 = vmatpush1.bf16.msra.mxu0 0
    %979 = vmatprep.subr.bf16.mxu0 0
    %980 = vmatpush1.bf16.msra.mxu0 0
    %981 = vmatprep.subr.bf16.mxu0 0
    %982 = vmatpush1.bf16.msra.mxu0 0
    %983 = vmatprep.subr.bf16.mxu0 0
    %984 = vmatpush1.bf16.msra.mxu0 0
    %985 = vmatprep.subr.bf16.mxu0 0
    %986 = vmatpush1.bf16.msra.mxu0 0
    %987 = vmatprep.mubr.bf16.mxu0 %v912
    %988 = vmatmul.mubr.bf16.gmra.mrb[0].mxu0 %v388
    %v989 = vpop.f32.mrb[0].mxu0
    %v990 = vadd.f32 %v949, %v989
    %v991 = vpop.f32.mrb[0].mxu0
    %v992 = vadd.f32 %v951, %v991
    %v993 = vpop.f32.mrb[0].mxu0
    %v994 = vpop.f32.mrb[0].mxu0
    %995 = vdwg.mxu0
    %996 = vmatprep.subr.bf16.mxu0 0
    %997 = vmatpush1.bf16.msra.mxu0 %v762
    %998 = vmatprep.subr.bf16.mxu0 0
    %999 = vmatpush1.bf16.msra.mxu0 %v765
    %1000 = vmatprep.subr.bf16.mxu0 0
    %1001 = vmatpush1.bf16.msra.mxu0 %v768
    %1002 = vmatprep.subr.bf16.mxu0 0
    %1003 = vmatpush1.bf16.msra.mxu0 %v771
    %1004 = vmatprep.subr.bf16.mxu0 0
    %1005 = vmatpush1.bf16.msra.mxu0 %v774
    %1006 = vmatprep.subr.bf16.mxu0 0
    %1007 = vmatpush1.bf16.msra.mxu0 %v777
    %1008 = vmatprep.subr.bf16.mxu0 0
    %1009 = vmatpush1.bf16.msra.mxu0 %v780
    %1010 = vmatprep.subr.bf16.mxu0 0
    %1011 = vmatpush1.bf16.msra.mxu0 %v783
    %1012 = vmatprep.subr.bf16.mxu0 0
    %1013 = vmatpush1.bf16.msra.mxu0 %v786
    %1014 = vmatprep.subr.bf16.mxu0 0
    %1015 = vmatpush1.bf16.msra.mxu0 %v789
    %1016 = vmatprep.subr.bf16.mxu0 0
    %1017 = vmatpush1.bf16.msra.mxu0 %v792
    %1018 = vmatprep.subr.bf16.mxu0 0
    %1019 = vmatpush1.bf16.msra.mxu0 %v795
    %1020 = vmatprep.subr.bf16.mxu0 0
    %1021 = vmatpush1.bf16.msra.mxu0 %v798
    %1022 = vmatprep.subr.bf16.mxu0 0
    %1023 = vmatpush1.bf16.msra.mxu0 %v801
    %1024 = vmatprep.subr.bf16.mxu0 0
    %1025 = vmatpush1.bf16.msra.mxu0 %v804
    %1026 = vmatprep.subr.bf16.mxu0 0
    %1027 = vmatpush1.bf16.msra.mxu0 %v807
    %1028 = vmatprep.mubr.bf16.mxu0 %v387
    %1029 = vmatmul.mubr.bf16.gmra.mrb[0].mxu0 %v386
    %v1030 = vpop.f32.mrb[0].mxu0
    %v1031 = vadd.f32 %v506, %v1030
    %v1032 = vpop.f32.mrb[0].mxu0
    %v1033 = vpop.f32.mrb[0].mxu0
    %v1034 = vpop.f32.mrb[0].mxu0
    %1035 = vdwg.mxu0
    %1036 = vmatprep.subr.bf16.mxu0 0
    %1037 = vmatpush1.bf16.msra.mxu0 %v810
    %1038 = vmatprep.subr.bf16.mxu0 0
    %1039 = vmatpush1.bf16.msra.mxu0 %v813
    %1040 = vmatprep.subr.bf16.mxu0 0
    %1041 = vmatpush1.bf16.msra.mxu0 %v816
    %1042 = vmatprep.subr.bf16.mxu0 0
    %1043 = vmatpush1.bf16.msra.mxu0 %v819
    %1044 = vmatprep.subr.bf16.mxu0 0
    %1045 = vmatpush1.bf16.msra.mxu0 %v822
    %1046 = vmatprep.subr.bf16.mxu0 0
    %1047 = vmatpush1.bf16.msra.mxu0 %v825
    %1048 = vmatprep.subr.bf16.mxu0 0
    %1049 = vmatpush1.bf16.msra.mxu0 %v828
    %1050 = vmatprep.subr.bf16.mxu0 0
    %1051 = vmatpush1.bf16.msra.mxu0 %v831
    %1052 = vmatprep.subr.bf16.mxu0 0
    %1053 = vmatpush1.bf16.msra.mxu0 %v834
    %1054 = vmatprep.subr.bf16.mxu0 0
    %1055 = vmatpush1.bf16.msra.mxu0 0
    %1056 = vmatprep.subr.bf16.mxu0 0
    %1057 = vmatpush1.bf16.msra.mxu0 0
    %1058 = vmatprep.subr.bf16.mxu0 0
    %1059 = vmatpush1.bf16.msra.mxu0 0
    %1060 = vmatprep.subr.bf16.mxu0 0
    %1061 = vmatpush1.bf16.msra.mxu0 0
    %1062 = vmatprep.subr.bf16.mxu0 0
    %1063 = vmatpush1.bf16.msra.mxu0 0
    %1064 = vmatprep.subr.bf16.mxu0 0
    %1065 = vmatpush1.bf16.msra.mxu0 0
    %1066 = vmatprep.subr.bf16.mxu0 0
    %1067 = vmatpush1.bf16.msra.mxu0 0
    %1068 = vmatprep.mubr.bf16.mxu0 %v912
    %1069 = vmatmul.mubr.bf16.gmra.mrb[0].mxu0 %v388
    %v1070 = vpop.f32.mrb[0].mxu0
    %v1071 = vadd.f32 %v1031, %v1070
    %v1072 = vpop.f32.mrb[0].mxu0
    %v1073 = vpop.f32.mrb[0].mxu0
    %v1074 = vpop.f32.mrb[0].mxu0
    %1075 = vdwg.mxu0
    %v1076 = vld [vmem:[#allocation6] sm:$0xff]
    %v1077 = vld [vmem:[#allocation6 + $0x8] sm:$0xf]
    %v1078 = vld [vmem:[#allocation6 + $0xc] sm:$0xff]
    %v1079 = vld [vmem:[#allocation6 + $0x14] sm:$0xf]
    %v1080 = vld [vmem:[#allocation6 + $0x18] sm:$0xff]
    %v1081 = vld [vmem:[#allocation6 + $0x20] sm:$0xf]
    %v1082 = vld [vmem:[#allocation6 + $0x24] sm:$0xff]
    %v1083 = vld [vmem:[#allocation6 + $0x2c] sm:$0xf]
    %v1084 = vld [vmem:[#allocation6 + $0x30] sm:$0xff]
    %v1085 = vld [vmem:[#allocation6 + $0x38] sm:$0xf]
    %v1086 = vld [vmem:[#allocation6 + $0x3c] sm:$0xff]
    %v1087 = vld [vmem:[#allocation6 + $0x44] sm:$0xf]
    %v1088 = vld [vmem:[#allocation6 + $0x48] sm:$0xff]
    %v1089 = vld [vmem:[#allocation6 + $0x50] sm:$0xf]
    %v1090 = vld [vmem:[#allocation6 + $0x54] sm:$0xff]
    %v1091 = vld [vmem:[#allocation6 + $0x5c] sm:$0xf]
    %v1092 = vld [vmem:[#allocation6 + $0x60] sm:$0xff]
    %v1093 = vld [vmem:[#allocation6 + $0x68] sm:$0xf]
    %v1094 = vld [vmem:[#allocation6 + $0x6c] sm:$0xff]
    %v1095 = vld [vmem:[#allocation6 + $0x74] sm:$0xf]
    %v1096 = vld [vmem:[#allocation6 + $0x78] sm:$0xff]
    %v1097 = vld [vmem:[#allocation6 + $0x80] sm:$0xf]
    %v1098 = vld [vmem:[#allocation6 + $0x84] sm:$0xff]
    %v1099 = vld [vmem:[#allocation6 + $0x8c] sm:$0xf]
    %v1100 = vld [vmem:[#allocation6 + $0x90] sm:$0xff]
    %v1101 = vld [vmem:[#allocation6 + $0x98] sm:$0xf]
    %v1102 = vld [vmem:[#allocation6 + $0x9c] sm:$0xff]
    %v1103 = vld [vmem:[#allocation6 + $0xa4] sm:$0xf]
    %v1104 = vld [vmem:[#allocation6 + $0xa8] sm:$0xff]
    %v1105 = vld [vmem:[#allocation6 + $0xb0] sm:$0xf]
    %v1106 = vld [vmem:[#allocation6 + $0xb4] sm:$0xff]
    %v1107 = vld [vmem:[#allocation6 + $0xbc] sm:$0xf]
    %v1108 = vld [vmem:[#allocation6 + $0xc0] sm:$0xff]
    %v1109 = vld [vmem:[#allocation6 + $0xc8] sm:$0xf]
    %v1110 = vld [vmem:[#allocation6 + $0xcc] sm:$0xff]
    %v1111 = vld [vmem:[#allocation6 + $0xd4] sm:$0xf]
    %v1112 = vld [vmem:[#allocation6 + $0xd8] sm:$0xff]
    %v1113 = vld [vmem:[#allocation6 + $0xe0] sm:$0xf]
    %v1114 = vld [vmem:[#allocation6 + $0xe4] sm:$0xff]
    %v1115 = vld [vmem:[#allocation6 + $0xec] sm:$0xf]
    %v1116 = vld [vmem:[#allocation6 + $0xf0] sm:$0xff]
    %v1117 = vld [vmem:[#allocation6 + $0xf8] sm:$0xf]
    %v1118 = vld [vmem:[#allocation6 + $0xfc] sm:$0xff]
    %v1119 = vld [vmem:[#allocation6 + $0x104] sm:$0xf]
    %v1120 = vld [vmem:[#allocation6 + $0x108] sm:$0xff]
    %v1121 = vld [vmem:[#allocation6 + $0x110] sm:$0xf]
    %v1122 = vld [vmem:[#allocation6 + $0x114] sm:$0xff]
    %v1123 = vld [vmem:[#allocation6 + $0x11c] sm:$0xf]
    %v1124 = vld [vmem:[#allocation6 + $0x120] sm:$0xff]
    %v1125 = vld [vmem:[#allocation6 + $0x128] sm:$0xf]
    %v1126 = vld [vmem:[#allocation6 + $0x12c] sm:$0xff]
    %v1127 = vld [vmem:[#allocation6 + $0x134] sm:$0xf]
    %v1128 = vld [vmem:[#allocation6 + $0x138] sm:$0xff]
    %v1129 = vld [vmem:[#allocation6 + $0x140] sm:$0xf]
    %v1130 = vld [vmem:[#allocation6 + $0x144] sm:$0xff]
    %v1131 = vld [vmem:[#allocation6 + $0x14c] sm:$0xf]
    %v1132 = vld [vmem:[#allocation6 + $0x150] sm:$0xff]
    %v1133 = vld [vmem:[#allocation6 + $0x158] sm:$0xf]
    %v1134 = vld [vmem:[#allocation6 + $0x15c] sm:$0xff]
    %v1135 = vld [vmem:[#allocation6 + $0x164] sm:$0xf]
    %v1136 = vld [vmem:[#allocation6 + $0x168] sm:$0xff]
    %v1137 = vld [vmem:[#allocation6 + $0x170] sm:$0xf]
    %v1138 = vld [vmem:[#allocation6 + $0x174] sm:$0xff]
    %v1139 = vld [vmem:[#allocation6 + $0x17c] sm:$0xf]
    %v1140 = vld [vmem:[#allocation6 + $0x180] sm:$0xff]
    %v1141 = vld [vmem:[#allocation6 + $0x188] sm:$0xf]
    %v1142 = vld [vmem:[#allocation6 + $0x18c] sm:$0xff]
    %v1143 = vld [vmem:[#allocation6 + $0x194] sm:$0xf]
    %v1144 = vld [vmem:[#allocation6 + $0x198] sm:$0xff]
    %v1145 = vld [vmem:[#allocation6 + $0x1a0] sm:$0xf]
    %v1146 = vld [vmem:[#allocation6 + $0x1a4] sm:$0xff]
    %v1147 = vld [vmem:[#allocation6 + $0x1ac] sm:$0xf]
    %v1148 = vld [vmem:[#allocation6 + $0x1b0] sm:$0xff]
    %v1149 = vld [vmem:[#allocation6 + $0x1b8] sm:$0xf]
    %v1150 = vld [vmem:[#allocation6 + $0x1bc] sm:$0xff]
    %v1151 = vld [vmem:[#allocation6 + $0x1c4] sm:$0xf]
    %v1152 = vld [vmem:[#allocation6 + $0x1c8] sm:$0xff]
    %v1153 = vld [vmem:[#allocation6 + $0x1d0] sm:$0xf]
    %v1154 = vld [vmem:[#allocation6 + $0x1d4] sm:$0xff]
    %v1155 = vld [vmem:[#allocation6 + $0x1dc] sm:$0xf]
    %v1156 = vld [vmem:[#allocation6 + $0x1e0] sm:$0xff]
    %v1157 = vld [vmem:[#allocation6 + $0x1e8] sm:$0xf]
    %v1158 = vld [vmem:[#allocation6 + $0x1ec] sm:$0xff]
    %v1159 = vld [vmem:[#allocation6 + $0x1f4] sm:$0xf]
    %v1160 = vld [vmem:[#allocation6 + $0x1f8] sm:$0xff]
    %v1161 = vld [vmem:[#allocation6 + $0x200] sm:$0xf]
    %v1162 = vld [vmem:[#allocation6 + $0x204] sm:$0xff]
    %v1163 = vld [vmem:[#allocation6 + $0x20c] sm:$0xf]
    %v1164 = vld [vmem:[#allocation6 + $0x210] sm:$0xff]
    %v1165 = vld [vmem:[#allocation6 + $0x218] sm:$0xf]
    %v1166 = vld [vmem:[#allocation6 + $0x21c] sm:$0xff]
    %v1167 = vld [vmem:[#allocation6 + $0x224] sm:$0xf]
    %v1168 = vld [vmem:[#allocation6 + $0x228] sm:$0xff]
    %v1169 = vld [vmem:[#allocation6 + $0x230] sm:$0xf]
    %v1170 = vld [vmem:[#allocation6 + $0x234] sm:$0xff]
    %v1171 = vld [vmem:[#allocation6 + $0x23c] sm:$0xf]
    %v1172 = vld [vmem:[#allocation6 + $0x240] sm:$0xff]
    %v1173 = vld [vmem:[#allocation6 + $0x248] sm:$0xf]
    %v1174 = vld [vmem:[#allocation6 + $0x24c] sm:$0xff]
    %v1175 = vld [vmem:[#allocation6 + $0x254] sm:$0xf]
    %v1176 = vld [vmem:[%s6] sm:$0x7]
    %v1178 = vlaneseq
    %v1179 = vshrl.u32 %v1178, 7
    %v1180 = vsub.s32 0, %v1179
    %v1181 = vrot.slane %v1176, %v1180
    %v1182 = vlaneseq
    %v1183 = vshrl.u32 %v1182, 7
    %v1184 = vsub.s32 1, %v1183
    %v1185 = vrot.slane %v1176, %v1184
    %v1186 = vlaneseq
    %v1187 = vshrl.u32 %v1186, 7
    %v1188 = vsub.s32 2, %v1187
    %v1189 = vrot.slane %v1176, %v1188
    %1197 = vrot.lane.b32.xlu0 %v389, 112
    %v1198 = vpop.permute.xlu0 %1197
    %1199 = vrot.lane.b32.xlu0 %v390, 112
    %v1200 = vpop.permute.xlu0 %1199
    %1201 = vrot.lane.b32.xlu0 %v391, 112
    %v1202 = vpop.permute.xlu0 %1201
    %1203 = vrot.lane.b32.xlu0 %v392, 112
    %v1204 = vpop.permute.xlu0 %1203
    %vm1205 = vcmask 916480
    %v1206 = vsel %vm1205, %v1198, %v1200
    %v1207 = vsel %vm1205, %v1200, %v1202
    %v1208 = vsel %vm1205, %v1202, %v1204
    %v1312 = vunpack.c.l.b16 %v1076
    %v1313 = vunpack.c.h.b16 %v1076
    %v1314 = vunpack.c.l.b16 %v1077
    %v1315 = vunpack.c.l.b16 %v1078
    %v1316 = vunpack.c.h.b16 %v1078
    %v1317 = vunpack.c.l.b16 %v1079
    %v1318 = vunpack.c.l.b16 %v1080
    %v1319 = vunpack.c.h.b16 %v1080
    %v1320 = vunpack.c.l.b16 %v1081
    %v1321 = vunpack.c.l.b16 %v1082
    %v1322 = vunpack.c.h.b16 %v1082
    %v1323 = vunpack.c.l.b16 %v1083
    %v1324 = vunpack.c.l.b16 %v1084
    %v1325 = vunpack.c.h.b16 %v1084
    %v1326 = vunpack.c.l.b16 %v1085
    %v1327 = vunpack.c.l.b16 %v1086
    %v1328 = vunpack.c.h.b16 %v1086
    %v1329 = vunpack.c.l.b16 %v1087
    %v1330 = vunpack.c.l.b16 %v1088
    %v1331 = vunpack.c.h.b16 %v1088
    %v1332 = vunpack.c.l.b16 %v1089
    %v1333 = vunpack.c.l.b16 %v1090
    %v1334 = vunpack.c.h.b16 %v1090
    %v1335 = vunpack.c.l.b16 %v1091
    %v1336 = vunpack.c.l.b16 %v1092
    %v1337 = vunpack.c.h.b16 %v1092
    %v1338 = vunpack.c.l.b16 %v1093
    %v1339 = vunpack.c.l.b16 %v1094
    %v1340 = vunpack.c.h.b16 %v1094
    %v1341 = vunpack.c.l.b16 %v1095
    %v1342 = vunpack.c.l.b16 %v1096
    %v1343 = vunpack.c.h.b16 %v1096
    %v1344 = vunpack.c.l.b16 %v1097
    %v1345 = vunpack.c.l.b16 %v1098
    %v1346 = vunpack.c.h.b16 %v1098
    %v1347 = vunpack.c.l.b16 %v1099
    %v1348 = vunpack.c.l.b16 %v1100
    %v1349 = vunpack.c.h.b16 %v1100
    %v1350 = vunpack.c.l.b16 %v1101
    %v1351 = vunpack.c.l.b16 %v1102
    %v1352 = vunpack.c.h.b16 %v1102
    %v1353 = vunpack.c.l.b16 %v1103
    %v1354 = vunpack.c.l.b16 %v1104
    %v1355 = vunpack.c.h.b16 %v1104
    %v1356 = vunpack.c.l.b16 %v1105
    %v1357 = vunpack.c.l.b16 %v1106
    %v1358 = vunpack.c.h.b16 %v1106
    %v1359 = vunpack.c.l.b16 %v1107
    %v1360 = vunpack.c.l.b16 %v1108
    %v1361 = vunpack.c.h.b16 %v1108
    %v1362 = vunpack.c.l.b16 %v1109
    %v1363 = vunpack.c.l.b16 %v1110
    %v1364 = vunpack.c.h.b16 %v1110
    %v1365 = vunpack.c.l.b16 %v1111
    %v1366 = vunpack.c.l.b16 %v1112
    %v1367 = vunpack.c.h.b16 %v1112
    %v1368 = vunpack.c.l.b16 %v1113
    %v1369 = vunpack.c.l.b16 %v1114
    %v1370 = vunpack.c.h.b16 %v1114
    %v1371 = vunpack.c.l.b16 %v1115
    %v1372 = vunpack.c.l.b16 %v1116
    %v1373 = vunpack.c.h.b16 %v1116
    %v1374 = vunpack.c.l.b16 %v1117
    %v1375 = vunpack.c.l.b16 %v1118
    %v1376 = vunpack.c.h.b16 %v1118
    %v1377 = vunpack.c.l.b16 %v1119
    %v1378 = vunpack.c.l.b16 %v1120
    %v1379 = vunpack.c.h.b16 %v1120
    %v1380 = vunpack.c.l.b16 %v1121
    %v1381 = vunpack.c.l.b16 %v1122
    %v1382 = vunpack.c.h.b16 %v1122
    %v1383 = vunpack.c.l.b16 %v1123
    %v1384 = vunpack.c.l.b16 %v1124
    %v1385 = vunpack.c.h.b16 %v1124
    %v1386 = vunpack.c.l.b16 %v1125
    %v1387 = vunpack.c.l.b16 %v1126
    %v1388 = vunpack.c.h.b16 %v1126
    %v1389 = vunpack.c.l.b16 %v1127
    %v1390 = vunpack.c.l.b16 %v1128
    %v1391 = vunpack.c.h.b16 %v1128
    %v1392 = vunpack.c.l.b16 %v1129
    %v1393 = vunpack.c.l.b16 %v1130
    %v1394 = vunpack.c.h.b16 %v1130
    %v1395 = vunpack.c.l.b16 %v1131
    %v1396 = vunpack.c.l.b16 %v1132
    %v1397 = vunpack.c.h.b16 %v1132
    %v1398 = vunpack.c.l.b16 %v1133
    %v1399 = vunpack.c.l.b16 %v1134
    %v1400 = vunpack.c.h.b16 %v1134
    %v1401 = vunpack.c.l.b16 %v1135
    %v1402 = vunpack.c.l.b16 %v1136
    %v1403 = vunpack.c.h.b16 %v1136
    %v1404 = vunpack.c.l.b16 %v1137
    %v1405 = vunpack.c.l.b16 %v1138
    %v1406 = vunpack.c.h.b16 %v1138
    %v1407 = vunpack.c.l.b16 %v1139
    %v1408 = vunpack.c.l.b16 %v1140
    %v1409 = vunpack.c.h.b16 %v1140
    %v1410 = vunpack.c.l.b16 %v1141
    %v1411 = vunpack.c.l.b16 %v1142
    %v1412 = vunpack.c.h.b16 %v1142
    %v1413 = vunpack.c.l.b16 %v1143
    %v1414 = vunpack.c.l.b16 %v1144
    %v1415 = vunpack.c.h.b16 %v1144
    %v1416 = vunpack.c.l.b16 %v1145
    %v1417 = vunpack.c.l.b16 %v1146
    %v1418 = vunpack.c.h.b16 %v1146
    %v1419 = vunpack.c.l.b16 %v1147
    %v1420 = vunpack.c.l.b16 %v1148
    %v1421 = vunpack.c.h.b16 %v1148
    %v1422 = vunpack.c.l.b16 %v1149
    %v1423 = vunpack.c.l.b16 %v1150
    %v1424 = vunpack.c.h.b16 %v1150
    %v1425 = vunpack.c.l.b16 %v1151
    %v1426 = vunpack.c.l.b16 %v1152
    %v1427 = vunpack.c.h.b16 %v1152
    %v1428 = vunpack.c.l.b16 %v1153
    %v1429 = vunpack.c.l.b16 %v1154
    %v1430 = vunpack.c.h.b16 %v1154
    %v1431 = vunpack.c.l.b16 %v1155
    %v1432 = vunpack.c.l.b16 %v1156
    %v1433 = vunpack.c.h.b16 %v1156
    %v1434 = vunpack.c.l.b16 %v1157
    %v1435 = vunpack.c.l.b16 %v1158
    %v1436 = vunpack.c.h.b16 %v1158
    %v1437 = vunpack.c.l.b16 %v1159
    %v1438 = vunpack.c.l.b16 %v1160
    %v1439 = vunpack.c.h.b16 %v1160
    %v1440 = vunpack.c.l.b16 %v1161
    %v1441 = vunpack.c.l.b16 %v1162
    %v1442 = vunpack.c.h.b16 %v1162
    %v1443 = vunpack.c.l.b16 %v1163
    %v1444 = vunpack.c.l.b16 %v1164
    %v1445 = vunpack.c.h.b16 %v1164
    %v1446 = vunpack.c.l.b16 %v1165
    %v1447 = vunpack.c.l.b16 %v1166
    %v1448 = vunpack.c.h.b16 %v1166
    %v1449 = vunpack.c.l.b16 %v1167
    %v1450 = vunpack.c.l.b16 %v1168
    %v1451 = vunpack.c.h.b16 %v1168
    %v1452 = vunpack.c.l.b16 %v1169
    %v1453 = vunpack.c.l.b16 %v1170
    %v1454 = vunpack.c.h.b16 %v1170
    %v1455 = vunpack.c.l.b16 %v1171
    %v1456 = vunpack.c.l.b16 %v1172
    %v1457 = vunpack.c.h.b16 %v1172
    %v1458 = vunpack.c.l.b16 %v1173
    %v1459 = vunpack.c.l.b16 %v1174
    %v1460 = vunpack.c.h.b16 %v1174
    %v1461 = vunpack.c.l.b16 %v1175
    %v1462 = vpack.c.b16 %v1315, %v1312
    %v1463 = vpack.c.b16 %v1316, %v1313
    %v1464 = vpack.c.b16 %v1317, %v1314
    %v1465 = vpack.c.b16 %v1321, %v1318
    %v1466 = vpack.c.b16 %v1322, %v1319
    %v1467 = vpack.c.b16 %v1323, %v1320
    %v1468 = vpack.c.b16 %v1327, %v1324
    %v1469 = vpack.c.b16 %v1328, %v1325
    %v1470 = vpack.c.b16 %v1329, %v1326
    %v1471 = vpack.c.b16 %v1333, %v1330
    %v1472 = vpack.c.b16 %v1334, %v1331
    %v1473 = vpack.c.b16 %v1335, %v1332
    %v1474 = vpack.c.b16 %v1339, %v1336
    %v1475 = vpack.c.b16 %v1340, %v1337
    %v1476 = vpack.c.b16 %v1341, %v1338
    %v1477 = vpack.c.b16 %v1345, %v1342
    %v1478 = vpack.c.b16 %v1346, %v1343
    %v1479 = vpack.c.b16 %v1347, %v1344
    %v1480 = vpack.c.b16 %v1351, %v1348
    %v1481 = vpack.c.b16 %v1352, %v1349
    %v1482 = vpack.c.b16 %v1353, %v1350
    %v1483 = vpack.c.b16 %v1357, %v1354
    %v1484 = vpack.c.b16 %v1358, %v1355
    %v1485 = vpack.c.b16 %v1359, %v1356
    %v1486 = vpack.c.b16 %v1363, %v1360
    %v1487 = vpack.c.b16 %v1364, %v1361
    %v1488 = vpack.c.b16 %v1365, %v1362
    %v1489 = vpack.c.b16 %v1369, %v1366
    %v1490 = vpack.c.b16 %v1370, %v1367
    %v1491 = vpack.c.b16 %v1371, %v1368
    %v1492 = vpack.c.b16 %v1375, %v1372
    %v1493 = vpack.c.b16 %v1376, %v1373
    %v1494 = vpack.c.b16 %v1377, %v1374
    %v1495 = vpack.c.b16 %v1381, %v1378
    %v1496 = vpack.c.b16 %v1382, %v1379
    %v1497 = vpack.c.b16 %v1383, %v1380
    %v1498 = vpack.c.b16 %v1387, %v1384
    %v1499 = vpack.c.b16 %v1388, %v1385
    %v1500 = vpack.c.b16 %v1389, %v1386
    %v1501 = vpack.c.b16 %v1393, %v1390
    %v1502 = vpack.c.b16 %v1394, %v1391
    %v1503 = vpack.c.b16 %v1395, %v1392
    %v1504 = vpack.c.b16 %v1399, %v1396
    %v1505 = vpack.c.b16 %v1400, %v1397
    %v1506 = vpack.c.b16 %v1401, %v1398
    %v1507 = vpack.c.b16 %v1405, %v1402
    %v1508 = vpack.c.b16 %v1406, %v1403
    %v1509 = vpack.c.b16 %v1407, %v1404
    %v1510 = vpack.c.b16 %v1411, %v1408
    %v1511 = vpack.c.b16 %v1412, %v1409
    %v1512 = vpack.c.b16 %v1413, %v1410
    %v1513 = vpack.c.b16 %v1417, %v1414
    %v1514 = vpack.c.b16 %v1418, %v1415
    %v1515 = vpack.c.b16 %v1419, %v1416
    %v1516 = vpack.c.b16 %v1423, %v1420
    %v1517 = vpack.c.b16 %v1424, %v1421
    %v1518 = vpack.c.b16 %v1425, %v1422
    %v1519 = vpack.c.b16 %v1429, %v1426
    %v1520 = vpack.c.b16 %v1430, %v1427
    %v1521 = vpack.c.b16 %v1431, %v1428
    %v1522 = vpack.c.b16 %v1435, %v1432
    %v1523 = vpack.c.b16 %v1436, %v1433
    %v1524 = vpack.c.b16 %v1437, %v1434
    %v1525 = vpack.c.b16 %v1441, %v1438
    %v1526 = vpack.c.b16 %v1442, %v1439
    %v1527 = vpack.c.b16 %v1443, %v1440
    %v1528 = vpack.c.b16 %v1447, %v1444
    %v1529 = vpack.c.b16 %v1448, %v1445
    %v1530 = vpack.c.b16 %v1449, %v1446
    %v1531 = vpack.c.b16 %v1453, %v1450
    %v1532 = vpack.c.b16 %v1454, %v1451
    %v1533 = vpack.c.b16 %v1455, %v1452
    %v1534 = vpack.c.b16 %v1459, %v1456
    %v1535 = vpack.c.b16 %v1460, %v1457
    %v1536 = vpack.c.b16 %v1461, %v1458
    %v1613 = vsel %vm910, %v1204, 0
    %1615 = vmatprep.subr.bf16.mxu0 %v1463
    %1616 = vmatpush1.bf16.msra.mxu0 %v1462
    %1617 = vmatprep.subr.bf16.mxu0 %v1466
    %1618 = vmatpush1.bf16.msra.mxu0 %v1465
    %1619 = vmatprep.subr.bf16.mxu0 %v1469
    %1620 = vmatpush1.bf16.msra.mxu0 %v1468
    %1621 = vmatprep.subr.bf16.mxu0 %v1472
    %1622 = vmatpush1.bf16.msra.mxu0 %v1471
    %1623 = vmatprep.subr.bf16.mxu0 %v1475
    %1624 = vmatpush1.bf16.msra.mxu0 %v1474
    %1625 = vmatprep.subr.bf16.mxu0 %v1478
    %1626 = vmatpush1.bf16.msra.mxu0 %v1477
    %1627 = vmatprep.subr.bf16.mxu0 %v1481
    %1628 = vmatpush1.bf16.msra.mxu0 %v1480
    %1629 = vmatprep.subr.bf16.mxu0 %v1484
    %1630 = vmatpush1.bf16.msra.mxu0 %v1483
    %1631 = vmatprep.subr.bf16.mxu0 %v1487
    %1632 = vmatpush1.bf16.msra.mxu0 %v1486
    %1633 = vmatprep.subr.bf16.mxu0 %v1490
    %1634 = vmatpush1.bf16.msra.mxu0 %v1489
    %1635 = vmatprep.subr.bf16.mxu0 %v1493
    %1636 = vmatpush1.bf16.msra.mxu0 %v1492
    %1637 = vmatprep.subr.bf16.mxu0 %v1496
    %1638 = vmatpush1.bf16.msra.mxu0 %v1495
    %1639 = vmatprep.subr.bf16.mxu0 %v1499
    %1640 = vmatpush1.bf16.msra.mxu0 %v1498
    %1641 = vmatprep.subr.bf16.mxu0 %v1502
    %1642 = vmatpush1.bf16.msra.mxu0 %v1501
    %1643 = vmatprep.subr.bf16.mxu0 %v1505
    %1644 = vmatpush1.bf16.msra.mxu0 %v1504
    %1645 = vmatprep.subr.bf16.mxu0 %v1508
    %1646 = vmatpush1.bf16.msra.mxu0 %v1507
    %1647 = vmatprep.mubr.bf16.mxu0 %v1207
    %1648 = vmatmul.mubr.bf16.gmra.mrb[0].mxu0 %v1206
    %v1649 = vpop.f32.mrb[0].mxu0
    %v1650 = vadd.f32 %v1181, %v1649
    %v1651 = vpop.f32.mrb[0].mxu0
    %v1652 = vadd.f32 %v1185, %v1651
    %v1653 = vpop.f32.mrb[0].mxu0
    %v1654 = vpop.f32.mrb[0].mxu0
    %1655 = vdwg.mxu0
    %1656 = vmatprep.subr.bf16.mxu0 %v1511
    %1657 = vmatpush1.bf16.msra.mxu0 %v1510
    %1658 = vmatprep.subr.bf16.mxu0 %v1514
    %1659 = vmatpush1.bf16.msra.mxu0 %v1513
    %1660 = vmatprep.subr.bf16.mxu0 %v1517
    %1661 = vmatpush1.bf16.msra.mxu0 %v1516
    %1662 = vmatprep.subr.bf16.mxu0 %v1520
    %1663 = vmatpush1.bf16.msra.mxu0 %v1519
    %1664 = vmatprep.subr.bf16.mxu0 %v1523
    %1665 = vmatpush1.bf16.msra.mxu0 %v1522
    %1666 = vmatprep.subr.bf16.mxu0 %v1526
    %1667 = vmatpush1.bf16.msra.mxu0 %v1525
    %1668 = vmatprep.subr.bf16.mxu0 %v1529
    %1669 = vmatpush1.bf16.msra.mxu0 %v1528
    %1670 = vmatprep.subr.bf16.mxu0 %v1532
    %1671 = vmatpush1.bf16.msra.mxu0 %v1531
    %1672 = vmatprep.subr.bf16.mxu0 %v1535
    %1673 = vmatpush1.bf16.msra.mxu0 %v1534
    %1674 = vmatprep.subr.bf16.mxu0 0
    %1675 = vmatpush1.bf16.msra.mxu0 0
    %1676 = vmatprep.subr.bf16.mxu0 0
    %1677 = vmatpush1.bf16.msra.mxu0 0
    %1678 = vmatprep.subr.bf16.mxu0 0
    %1679 = vmatpush1.bf16.msra.mxu0 0
    %1680 = vmatprep.subr.bf16.mxu0 0
    %1681 = vmatpush1.bf16.msra.mxu0 0
    %1682 = vmatprep.subr.bf16.mxu0 0
    %1683 = vmatpush1.bf16.msra.mxu0 0
    %1684 = vmatprep.subr.bf16.mxu0 0
    %1685 = vmatpush1.bf16.msra.mxu0 0
    %1686 = vmatprep.subr.bf16.mxu0 0
    %1687 = vmatpush1.bf16.msra.mxu0 0
    %1688 = vmatprep.mubr.bf16.mxu0 %v1613
    %1689 = vmatmul.mubr.bf16.gmra.mrb[0].mxu0 %v1208
    %v1690 = vpop.f32.mrb[0].mxu0
    %v1691 = vadd.f32 %v1650, %v1690
    %v1692 = vpop.f32.mrb[0].mxu0
    %v1693 = vadd.f32 %v1652, %v1692
    %v1694 = vpop.f32.mrb[0].mxu0
    %v1695 = vpop.f32.mrb[0].mxu0
    %1696 = vdwg.mxu0
    %1697 = vmatprep.subr.bf16.mxu0 0
    %1698 = vmatpush1.bf16.msra.mxu0 %v1464
    %1699 = vmatprep.subr.bf16.mxu0 0
    %1700 = vmatpush1.bf16.msra.mxu0 %v1467
    %1701 = vmatprep.subr.bf16.mxu0 0
    %1702 = vmatpush1.bf16.msra.mxu0 %v1470
    %1703 = vmatprep.subr.bf16.mxu0 0
    %1704 = vmatpush1.bf16.msra.mxu0 %v1473
    %1705 = vmatprep.subr.bf16.mxu0 0
    %1706 = vmatpush1.bf16.msra.mxu0 %v1476
    %1707 = vmatprep.subr.bf16.mxu0 0
    %1708 = vmatpush1.bf16.msra.mxu0 %v1479
    %1709 = vmatprep.subr.bf16.mxu0 0
    %1710 = vmatpush1.bf16.msra.mxu0 %v1482
    %1711 = vmatprep.subr.bf16.mxu0 0
    %1712 = vmatpush1.bf16.msra.mxu0 %v1485
    %1713 = vmatprep.subr.bf16.mxu0 0
    %1714 = vmatpush1.bf16.msra.mxu0 %v1488
    %1715 = vmatprep.subr.bf16.mxu0 0
    %1716 = vmatpush1.bf16.msra.mxu0 %v1491
    %1717 = vmatprep.subr.bf16.mxu0 0
    %1718 = vmatpush1.bf16.msra.mxu0 %v1494
    %1719 = vmatprep.subr.bf16.mxu0 0
    %1720 = vmatpush1.bf16.msra.mxu0 %v1497
    %1721 = vmatprep.subr.bf16.mxu0 0
    %1722 = vmatpush1.bf16.msra.mxu0 %v1500
    %1723 = vmatprep.subr.bf16.mxu0 0
    %1724 = vmatpush1.bf16.msra.mxu0 %v1503
    %1725 = vmatprep.subr.bf16.mxu0 0
    %1726 = vmatpush1.bf16.msra.mxu0 %v1506
    %1727 = vmatprep.subr.bf16.mxu0 0
    %1728 = vmatpush1.bf16.msra.mxu0 %v1509
    %1729 = vmatprep.mubr.bf16.mxu0 %v1207
    %1730 = vmatmul.mubr.bf16.gmra.mrb[0].mxu0 %v1206
    %v1731 = vpop.f32.mrb[0].mxu0
    %v1732 = vadd.f32 %v1189, %v1731
    %v1733 = vpop.f32.mrb[0].mxu0
    %v1734 = vpop.f32.mrb[0].mxu0
    %v1735 = vpop.f32.mrb[0].mxu0
    %1736 = vdwg.mxu0
    %1737 = vmatprep.subr.bf16.mxu0 0
    %1738 = vmatpush1.bf16.msra.mxu0 %v1512
    %1739 = vmatprep.subr.bf16.mxu0 0
    %1740 = vmatpush1.bf16.msra.mxu0 %v1515
    %1741 = vmatprep.subr.bf16.mxu0 0
    %1742 = vmatpush1.bf16.msra.mxu0 %v1518
    %1743 = vmatprep.subr.bf16.mxu0 0
    %1744 = vmatpush1.bf16.msra.mxu0 %v1521
    %1745 = vmatprep.subr.bf16.mxu0 0
    %1746 = vmatpush1.bf16.msra.mxu0 %v1524
    %1747 = vmatprep.subr.bf16.mxu0 0
    %1748 = vmatpush1.bf16.msra.mxu0 %v1527
    %1749 = vmatprep.subr.bf16.mxu0 0
    %1750 = vmatpush1.bf16.msra.mxu0 %v1530
    %1751 = vmatprep.subr.bf16.mxu0 0
    %1752 = vmatpush1.bf16.msra.mxu0 %v1533
    %1753 = vmatprep.subr.bf16.mxu0 0
    %1754 = vmatpush1.bf16.msra.mxu0 %v1536
    %1755 = vmatprep.subr.bf16.mxu0 0
    %1756 = vmatpush1.bf16.msra.mxu0 0
    %1757 = vmatprep.subr.bf16.mxu0 0
    %1758 = vmatpush1.bf16.msra.mxu0 0
    %1759 = vmatprep.subr.bf16.mxu0 0
    %1760 = vmatpush1.bf16.msra.mxu0 0
    %1761 = vmatprep.subr.bf16.mxu0 0
    %1762 = vmatpush1.bf16.msra.mxu0 0
    %1763 = vmatprep.subr.bf16.mxu0 0
    %1764 = vmatpush1.bf16.msra.mxu0 0
    %1765 = vmatprep.subr.bf16.mxu0 0
    %1766 = vmatpush1.bf16.msra.mxu0 0
    %1767 = vmatprep.subr.bf16.mxu0 0
    %1768 = vmatpush1.bf16.msra.mxu0 0
    %1769 = vmatprep.mubr.bf16.mxu0 %v1613
    %1770 = vmatmul.mubr.bf16.gmra.mrb[0].mxu0 %v1208
    %v1771 = vpop.f32.mrb[0].mxu0
    %v1772 = vadd.f32 %v1732, %v1771
    %v1773 = vpop.f32.mrb[0].mxu0
    %v1774 = vpop.f32.mrb[0].mxu0
    %v1775 = vpop.f32.mrb[0].mxu0
    %1776 = vdwg.mxu0
    %vm1777 = vcmp.gt.f32.partialorder %v990, 0.0
    %vm1778 = vcmp.gt.f32.partialorder %v992, 0.0
    %vm1779 = vcmp.gt.f32.partialorder %v1071, 0.0
    %v1780 = vmul.f32 %v990, 0.01
    %v1781 = vmul.f32 %v992, 0.01
    %v1782 = vmul.f32 %v1071, 0.01
    %v1783 = vsel %vm1777, %v990, %v1780
    %v1784 = vsel %vm1778, %v992, %v1781
    %v1785 = vsel %vm1779, %v1071, %v1782
    %v1786 = vpack.c.bf16 %v1783, %v1783
    %v1787 = vpack.c.bf16 %v1784, %v1784
    %v1788 = vpack.c.bf16 %v1785, %v1785
    %vm1789 = vcmp.gt.f32.partialorder %v1691, 0.0
    %vm1790 = vcmp.gt.f32.partialorder %v1693, 0.0
    %vm1791 = vcmp.gt.f32.partialorder %v1772, 0.0
    %v1792 = vmul.f32 %v1691, 0.01
    %v1793 = vmul.f32 %v1693, 0.01
    %v1794 = vmul.f32 %v1772, 0.01
    %v1795 = vsel %vm1789, %v1691, %v1792
    %v1796 = vsel %vm1790, %v1693, %v1793
    %v1797 = vsel %vm1791, %v1772, %v1794
    %v1798 = vpack.c.bf16 %v1795, %v1795
    %v1799 = vpack.c.bf16 %v1796, %v1796
    %v1800 = vpack.c.bf16 %v1797, %v1797
    %v1801 = vld [vmem:[%s7] sm:$0xf]
    %v1802 = vld [vmem:[%s7 + $0x4] sm:$0xf]
    %v1803 = vld [vmem:[%s7 + $0x8] sm:$0xf]
    %v1804 = vld [vmem:[%s7 + $0xc] sm:$0xf]
    %v1805 = vld [vmem:[%s7 + $0x10] sm:$0xf]
    %v1806 = vld [vmem:[%s7 + $0x14] sm:$0xf]
    %v1807 = vld [vmem:[%s7 + $0x18] sm:$0xf]
    %v1808 = vld [vmem:[%s7 + $0x1c] sm:$0xf]
    %v1809 = vld [vmem:[%s7 + $0x20] sm:$0xf]
    %v1810 = vld [vmem:[%s7 + $0x24] sm:$0xf]
    %v1811 = vld [vmem:[%s7 + $0x28] sm:$0xf]
    %v1812 = vld [vmem:[%s7 + $0x2c] sm:$0xf]
    %v1813 = vld [vmem:[%s7 + $0x30] sm:$0xf]
    %v1814 = vld [vmem:[%s7 + $0x34] sm:$0xf]
    %v1815 = vld [vmem:[%s7 + $0x38] sm:$0xf]
    %v1816 = vld [vmem:[%s7 + $0x3c] sm:$0xf]
    %v1817 = vld [vmem:[%s7 + $0x40] sm:$0xf]
    %v1818 = vld [vmem:[%s7 + $0x44] sm:$0xf]
    %v1819 = vld [vmem:[%s7 + $0x48] sm:$0xf]
    %v1820 = vld [vmem:[%s7 + $0x4c] sm:$0xf]
    %v1821 = vld [vmem:[%s7 + $0x50] sm:$0xf]
    %v1822 = vld [vmem:[%s7 + $0x54] sm:$0xf]
    %v1823 = vld [vmem:[%s7 + $0x58] sm:$0xf]
    %v1824 = vld [vmem:[%s7 + $0x5c] sm:$0xf]
    %v1825 = vld [vmem:[%s7 + $0x60] sm:$0xf]
    %v1826 = vld [vmem:[%s7 + $0x64] sm:$0xf]
    %v1827 = vld [vmem:[%s7 + $0x68] sm:$0xf]
    %v1828 = vld [vmem:[%s7 + $0x6c] sm:$0xf]
    %v1829 = vld [vmem:[%s7 + $0x70] sm:$0xf]
    %v1830 = vld [vmem:[%s7 + $0x74] sm:$0xf]
    %v1831 = vld [vmem:[%s7 + $0x78] sm:$0xf]
    %v1832 = vld [vmem:[%s7 + $0x7c] sm:$0xf]
    %v1833 = vld [vmem:[%s7 + $0x80] sm:$0xf]
    %v1834 = vld [vmem:[%s7 + $0x84] sm:$0xf]
    %v1835 = vld [vmem:[%s7 + $0x88] sm:$0xf]
    %v1836 = vld [vmem:[%s7 + $0x8c] sm:$0xf]
    %v1837 = vld [vmem:[%s7 + $0x90] sm:$0xf]
    %v1838 = vld [vmem:[%s7 + $0x94] sm:$0x3]
    %v1839 = vld [vmem:[#allocation2] sm:$0x1]
    %v1841 = vlaneseq
    %v1842 = vshrl.u32 %v1841, 7
    %v1843 = vsub.s32 0, %v1842
    %v1844 = vrot.slane %v1839, %v1843
    %v1884 = vunpack.c.l.b16 %v1801
    %v1885 = vunpack.c.l.b16 %v1802
    %v1886 = vunpack.c.l.b16 %v1803
    %v1887 = vunpack.c.l.b16 %v1804
    %v1888 = vunpack.c.l.b16 %v1805
    %v1889 = vunpack.c.l.b16 %v1806
    %v1890 = vunpack.c.l.b16 %v1807
    %v1891 = vunpack.c.l.b16 %v1808
    %v1892 = vunpack.c.l.b16 %v1809
    %v1893 = vunpack.c.l.b16 %v1810
    %v1894 = vunpack.c.l.b16 %v1811
    %v1895 = vunpack.c.l.b16 %v1812
    %v1896 = vunpack.c.l.b16 %v1813
    %v1897 = vunpack.c.l.b16 %v1814
    %v1898 = vunpack.c.l.b16 %v1815
    %v1899 = vunpack.c.l.b16 %v1816
    %v1900 = vunpack.c.l.b16 %v1817
    %v1901 = vunpack.c.l.b16 %v1818
    %v1902 = vunpack.c.l.b16 %v1819
    %v1903 = vunpack.c.l.b16 %v1820
    %v1904 = vunpack.c.l.b16 %v1821
    %v1905 = vunpack.c.l.b16 %v1822
    %v1906 = vunpack.c.l.b16 %v1823
    %v1907 = vunpack.c.l.b16 %v1824
    %v1908 = vunpack.c.l.b16 %v1825
    %v1909 = vunpack.c.l.b16 %v1826
    %v1910 = vunpack.c.l.b16 %v1827
    %v1911 = vunpack.c.l.b16 %v1828
    %v1912 = vunpack.c.l.b16 %v1829
    %v1913 = vunpack.c.l.b16 %v1830
    %v1914 = vunpack.c.l.b16 %v1831
    %v1915 = vunpack.c.l.b16 %v1832
    %v1916 = vunpack.c.l.b16 %v1833
    %v1917 = vunpack.c.l.b16 %v1834
    %v1918 = vunpack.c.l.b16 %v1835
    %v1919 = vunpack.c.l.b16 %v1836
    %v1920 = vunpack.c.l.b16 %v1837
    %v1921 = vunpack.c.l.b16 %v1838
    %v1922 = vpack.c.b16 %v1885, %v1884
    %v1923 = vpack.c.b16 %v1887, %v1886
    %v1924 = vpack.c.b16 %v1889, %v1888
    %v1925 = vpack.c.b16 %v1891, %v1890
    %v1926 = vpack.c.b16 %v1893, %v1892
    %v1927 = vpack.c.b16 %v1895, %v1894
    %v1928 = vpack.c.b16 %v1897, %v1896
    %v1929 = vpack.c.b16 %v1899, %v1898
    %v1930 = vpack.c.b16 %v1901, %v1900
    %v1931 = vpack.c.b16 %v1903, %v1902
    %v1932 = vpack.c.b16 %v1905, %v1904
    %v1933 = vpack.c.b16 %v1907, %v1906
    %v1934 = vpack.c.b16 %v1909, %v1908
    %v1935 = vpack.c.b16 %v1911, %v1910
    %v1936 = vpack.c.b16 %v1913, %v1912
    %v1937 = vpack.c.b16 %v1915, %v1914
    %v1938 = vpack.c.b16 %v1917, %v1916
    %v1939 = vpack.c.b16 %v1919, %v1918
    %v1940 = vpack.c.b16 %v1921, %v1920
    %vm1959 = vcmask 359424
    %v1961 = vsel %vm1959, %v1788, 0
    %vm1963 = vcmask 1045504
    %v1965 = vsel %vm1963, %v1940, 0
    %1967 = vmatprep.subr.bf16.mxu0 0
    %1968 = vmatpush1.bf16.msra.mxu0 %v1922
    %1969 = vmatprep.subr.bf16.mxu0 0
    %1970 = vmatpush1.bf16.msra.mxu0 %v1923
    %1971 = vmatprep.subr.bf16.mxu0 0
    %1972 = vmatpush1.bf16.msra.mxu0 %v1924
    %1973 = vmatprep.subr.bf16.mxu0 0
    %1974 = vmatpush1.bf16.msra.mxu0 %v1925
    %1975 = vmatprep.subr.bf16.mxu0 0
    %1976 = vmatpush1.bf16.msra.mxu0 %v1926
    %1977 = vmatprep.subr.bf16.mxu0 0
    %1978 = vmatpush1.bf16.msra.mxu0 %v1927
    %1979 = vmatprep.subr.bf16.mxu0 0
    %1980 = vmatpush1.bf16.msra.mxu0 %v1928
    %1981 = vmatprep.subr.bf16.mxu0 0
    %1982 = vmatpush1.bf16.msra.mxu0 %v1929
    %1983 = vmatprep.subr.bf16.mxu0 0
    %1984 = vmatpush1.bf16.msra.mxu0 %v1930
    %1985 = vmatprep.subr.bf16.mxu0 0
    %1986 = vmatpush1.bf16.msra.mxu0 %v1931
    %1987 = vmatprep.subr.bf16.mxu0 0
    %1988 = vmatpush1.bf16.msra.mxu0 %v1932
    %1989 = vmatprep.subr.bf16.mxu0 0
    %1990 = vmatpush1.bf16.msra.mxu0 %v1933
    %1991 = vmatprep.subr.bf16.mxu0 0
    %1992 = vmatpush1.bf16.msra.mxu0 %v1934
    %1993 = vmatprep.subr.bf16.mxu0 0
    %1994 = vmatpush1.bf16.msra.mxu0 %v1935
    %1995 = vmatprep.subr.bf16.mxu0 0
    %1996 = vmatpush1.bf16.msra.mxu0 %v1936
    %1997 = vmatprep.subr.bf16.mxu0 0
    %1998 = vmatpush1.bf16.msra.mxu0 %v1937
    %1999 = vmatprep.mubr.bf16.mxu0 %v1787
    %2000 = vmatmul.mubr.bf16.gmra.mrb[0].mxu0 %v1786
    %v2001 = vpop.f32.mrb[0].mxu0
    %v2002 = vadd.f32 %v1844, %v2001
    %v2003 = vpop.f32.mrb[0].mxu0
    %v2004 = vpop.f32.mrb[0].mxu0
    %v2005 = vpop.f32.mrb[0].mxu0
    %2006 = vdwg.mxu0
    %2007 = vmatprep.subr.bf16.mxu0 0
    %2008 = vmatpush1.bf16.msra.mxu0 %v1938
    %2009 = vmatprep.subr.bf16.mxu0 0
    %2010 = vmatpush1.bf16.msra.mxu0 %v1939
    %2011 = vmatprep.subr.bf16.mxu0 0
    %2012 = vmatpush1.bf16.msra.mxu0 %v1965
    %2013 = vmatprep.subr.bf16.mxu0 0
    %2014 = vmatpush1.bf16.msra.mxu0 0
    %2015 = vmatprep.subr.bf16.mxu0 0
    %2016 = vmatpush1.bf16.msra.mxu0 0
    %2017 = vmatprep.subr.bf16.mxu0 0
    %2018 = vmatpush1.bf16.msra.mxu0 0
    %2019 = vmatprep.subr.bf16.mxu0 0
    %2020 = vmatpush1.bf16.msra.mxu0 0
    %2021 = vmatprep.subr.bf16.mxu0 0
    %2022 = vmatpush1.bf16.msra.mxu0 0
    %2023 = vmatprep.subr.bf16.mxu0 0
    %2024 = vmatpush1.bf16.msra.mxu0 0
    %2025 = vmatprep.subr.bf16.mxu0 0
    %2026 = vmatpush1.bf16.msra.mxu0 0
    %2027 = vmatprep.subr.bf16.mxu0 0
    %2028 = vmatpush1.bf16.msra.mxu0 0
    %2029 = vmatprep.subr.bf16.mxu0 0
    %2030 = vmatpush1.bf16.msra.mxu0 0
    %2031 = vmatprep.subr.bf16.mxu0 0
    %2032 = vmatpush1.bf16.msra.mxu0 0
    %2033 = vmatprep.subr.bf16.mxu0 0
    %2034 = vmatpush1.bf16.msra.mxu0 0
    %2035 = vmatprep.subr.bf16.mxu0 0
    %2036 = vmatpush1.bf16.msra.mxu0 0
    %2037 = vmatprep.subr.bf16.mxu0 0
    %2038 = vmatpush1.bf16.msra.mxu0 0
    %2039 = vmatprep.mubr.bf16.mxu0 0
    %2040 = vmatmul.mubr.bf16.gmra.mrb[0].mxu0 %v1961
    %v2041 = vpop.f32.mrb[0].mxu0
    %v2042 = vadd.f32 %v2002, %v2041
    %v2043 = vpop.f32.mrb[0].mxu0
    %v2044 = vpop.f32.mrb[0].mxu0
    %v2045 = vpop.f32.mrb[0].mxu0
    %2046 = vdwg.mxu0
    %v2047 = vld [vmem:[%s9] sm:$0xf]
    %v2048 = vld [vmem:[%s9 + $0x4] sm:$0xf]
    %v2049 = vld [vmem:[%s9 + $0x8] sm:$0xf]
    %v2050 = vld [vmem:[%s9 + $0xc] sm:$0xf]
    %v2051 = vld [vmem:[%s9 + $0x10] sm:$0xf]
    %v2052 = vld [vmem:[%s9 + $0x14] sm:$0xf]
    %v2053 = vld [vmem:[%s9 + $0x18] sm:$0xf]
    %v2054 = vld [vmem:[%s9 + $0x1c] sm:$0xf]
    %v2055 = vld [vmem:[%s9 + $0x20] sm:$0xf]
    %v2056 = vld [vmem:[%s9 + $0x24] sm:$0xf]
    %v2057 = vld [vmem:[%s9 + $0x28] sm:$0xf]
    %v2058 = vld [vmem:[%s9 + $0x2c] sm:$0xf]
    %v2059 = vld [vmem:[%s9 + $0x30] sm:$0xf]
    %v2060 = vld [vmem:[%s9 + $0x34] sm:$0xf]
    %v2061 = vld [vmem:[%s9 + $0x38] sm:$0xf]
    %v2062 = vld [vmem:[%s9 + $0x3c] sm:$0xf]
    %v2063 = vld [vmem:[%s9 + $0x40] sm:$0xf]
    %v2064 = vld [vmem:[%s9 + $0x44] sm:$0xf]
    %v2065 = vld [vmem:[%s9 + $0x48] sm:$0xf]
    %v2066 = vld [vmem:[%s9 + $0x4c] sm:$0xf]
    %v2067 = vld [vmem:[%s9 + $0x50] sm:$0xf]
    %v2068 = vld [vmem:[%s9 + $0x54] sm:$0xf]
    %v2069 = vld [vmem:[%s9 + $0x58] sm:$0xf]
    %v2070 = vld [vmem:[%s9 + $0x5c] sm:$0xf]
    %v2071 = vld [vmem:[%s9 + $0x60] sm:$0xf]
    %v2072 = vld [vmem:[%s9 + $0x64] sm:$0xf]
    %v2073 = vld [vmem:[%s9 + $0x68] sm:$0xf]
    %v2074 = vld [vmem:[%s9 + $0x6c] sm:$0xf]
    %v2075 = vld [vmem:[%s9 + $0x70] sm:$0xf]
    %v2076 = vld [vmem:[%s9 + $0x74] sm:$0xf]
    %v2077 = vld [vmem:[%s9 + $0x78] sm:$0xf]
    %v2078 = vld [vmem:[%s9 + $0x7c] sm:$0xf]
    %v2079 = vld [vmem:[%s9 + $0x80] sm:$0xf]
    %v2080 = vld [vmem:[%s9 + $0x84] sm:$0xf]
    %v2081 = vld [vmem:[%s9 + $0x88] sm:$0xf]
    %v2082 = vld [vmem:[%s9 + $0x8c] sm:$0xf]
    %v2083 = vld [vmem:[%s9 + $0x90] sm:$0xf]
    %v2084 = vld [vmem:[%s9 + $0x94] sm:$0x3]
    %v2085 = vld [vmem:[#allocation3] sm:$0x1]
    %v2087 = vlaneseq
    %v2088 = vshrl.u32 %v2087, 7
    %v2089 = vsub.s32 0, %v2088
    %v2090 = vrot.slane %v2085, %v2089
    %v2130 = vunpack.c.l.b16 %v2047
    %v2131 = vunpack.c.l.b16 %v2048
    %v2132 = vunpack.c.l.b16 %v2049
    %v2133 = vunpack.c.l.b16 %v2050
    %v2134 = vunpack.c.l.b16 %v2051
    %v2135 = vunpack.c.l.b16 %v2052
    %v2136 = vunpack.c.l.b16 %v2053
    %v2137 = vunpack.c.l.b16 %v2054
    %v2138 = vunpack.c.l.b16 %v2055
    %v2139 = vunpack.c.l.b16 %v2056
    %v2140 = vunpack.c.l.b16 %v2057
    %v2141 = vunpack.c.l.b16 %v2058
    %v2142 = vunpack.c.l.b16 %v2059
    %v2143 = vunpack.c.l.b16 %v2060
    %v2144 = vunpack.c.l.b16 %v2061
    %v2145 = vunpack.c.l.b16 %v2062
    %v2146 = vunpack.c.l.b16 %v2063
    %v2147 = vunpack.c.l.b16 %v2064
    %v2148 = vunpack.c.l.b16 %v2065
    %v2149 = vunpack.c.l.b16 %v2066
    %v2150 = vunpack.c.l.b16 %v2067
    %v2151 = vunpack.c.l.b16 %v2068
    %v2152 = vunpack.c.l.b16 %v2069
    %v2153 = vunpack.c.l.b16 %v2070
    %v2154 = vunpack.c.l.b16 %v2071
    %v2155 = vunpack.c.l.b16 %v2072
    %v2156 = vunpack.c.l.b16 %v2073
    %v2157 = vunpack.c.l.b16 %v2074
    %v2158 = vunpack.c.l.b16 %v2075
    %v2159 = vunpack.c.l.b16 %v2076
    %v2160 = vunpack.c.l.b16 %v2077
    %v2161 = vunpack.c.l.b16 %v2078
    %v2162 = vunpack.c.l.b16 %v2079
    %v2163 = vunpack.c.l.b16 %v2080
    %v2164 = vunpack.c.l.b16 %v2081
    %v2165 = vunpack.c.l.b16 %v2082
    %v2166 = vunpack.c.l.b16 %v2083
    %v2167 = vunpack.c.l.b16 %v2084
    %v2168 = vpack.c.b16 %v2131, %v2130
    %v2169 = vpack.c.b16 %v2133, %v2132
    %v2170 = vpack.c.b16 %v2135, %v2134
    %v2171 = vpack.c.b16 %v2137, %v2136
    %v2172 = vpack.c.b16 %v2139, %v2138
    %v2173 = vpack.c.b16 %v2141, %v2140
    %v2174 = vpack.c.b16 %v2143, %v2142
    %v2175 = vpack.c.b16 %v2145, %v2144
    %v2176 = vpack.c.b16 %v2147, %v2146
    %v2177 = vpack.c.b16 %v2149, %v2148
    %v2178 = vpack.c.b16 %v2151, %v2150
    %v2179 = vpack.c.b16 %v2153, %v2152
    %v2180 = vpack.c.b16 %v2155, %v2154
    %v2181 = vpack.c.b16 %v2157, %v2156
    %v2182 = vpack.c.b16 %v2159, %v2158
    %v2183 = vpack.c.b16 %v2161, %v2160
    %v2184 = vpack.c.b16 %v2163, %v2162
    %v2185 = vpack.c.b16 %v2165, %v2164
    %v2186 = vpack.c.b16 %v2167, %v2166
    %v2206 = vsel %vm1959, %v1800, 0
    %v2209 = vsel %vm1963, %v2186, 0
    %2211 = vmatprep.subr.bf16.mxu0 0
    %2212 = vmatpush1.bf16.msra.mxu0 %v2168
    %2213 = vmatprep.subr.bf16.mxu0 0
    %2214 = vmatpush1.bf16.msra.mxu0 %v2169
    %2215 = vmatprep.subr.bf16.mxu0 0
    %2216 = vmatpush1.bf16.msra.mxu0 %v2170
    %2217 = vmatprep.subr.bf16.mxu0 0
    %2218 = vmatpush1.bf16.msra.mxu0 %v2171
    %2219 = vmatprep.subr.bf16.mxu0 0
    %2220 = vmatpush1.bf16.msra.mxu0 %v2172
    %2221 = vmatprep.subr.bf16.mxu0 0
    %2222 = vmatpush1.bf16.msra.mxu0 %v2173
    %2223 = vmatprep.subr.bf16.mxu0 0
    %2224 = vmatpush1.bf16.msra.mxu0 %v2174
    %2225 = vmatprep.subr.bf16.mxu0 0
    %2226 = vmatpush1.bf16.msra.mxu0 %v2175
    %2227 = vmatprep.subr.bf16.mxu0 0
    %2228 = vmatpush1.bf16.msra.mxu0 %v2176
    %2229 = vmatprep.subr.bf16.mxu0 0
    %2230 = vmatpush1.bf16.msra.mxu0 %v2177
    %2231 = vmatprep.subr.bf16.mxu0 0
    %2232 = vmatpush1.bf16.msra.mxu0 %v2178
    %2233 = vmatprep.subr.bf16.mxu0 0
    %2234 = vmatpush1.bf16.msra.mxu0 %v2179
    %2235 = vmatprep.subr.bf16.mxu0 0
    %2236 = vmatpush1.bf16.msra.mxu0 %v2180
    %2237 = vmatprep.subr.bf16.mxu0 0
    %2238 = vmatpush1.bf16.msra.mxu0 %v2181
    %2239 = vmatprep.subr.bf16.mxu0 0
    %2240 = vmatpush1.bf16.msra.mxu0 %v2182
    %2241 = vmatprep.subr.bf16.mxu0 0
    %2242 = vmatpush1.bf16.msra.mxu0 %v2183
    %2243 = vmatprep.mubr.bf16.mxu0 %v1799
    %2244 = vmatmul.mubr.bf16.gmra.mrb[0].mxu0 %v1798
    %v2245 = vpop.f32.mrb[0].mxu0
    %v2246 = vadd.f32 %v2090, %v2245
    %v2247 = vpop.f32.mrb[0].mxu0
    %v2248 = vpop.f32.mrb[0].mxu0
    %v2249 = vpop.f32.mrb[0].mxu0
    %2250 = vdwg.mxu0
    %2251 = vmatprep.subr.bf16.mxu0 0
    %2252 = vmatpush1.bf16.msra.mxu0 %v2184
    %2253 = vmatprep.subr.bf16.mxu0 0
    %2254 = vmatpush1.bf16.msra.mxu0 %v2185
    %2255 = vmatprep.subr.bf16.mxu0 0
    %2256 = vmatpush1.bf16.msra.mxu0 %v2209
    %2257 = vmatprep.subr.bf16.mxu0 0
    %2258 = vmatpush1.bf16.msra.mxu0 0
    %2259 = vmatprep.subr.bf16.mxu0 0
    %2260 = vmatpush1.bf16.msra.mxu0 0
    %2261 = vmatprep.subr.bf16.mxu0 0
    %2262 = vmatpush1.bf16.msra.mxu0 0
    %2263 = vmatprep.subr.bf16.mxu0 0
    %2264 = vmatpush1.bf16.msra.mxu0 0
    %2265 = vmatprep.subr.bf16.mxu0 0
    %2266 = vmatpush1.bf16.msra.mxu0 0
    %2267 = vmatprep.subr.bf16.mxu0 0
    %2268 = vmatpush1.bf16.msra.mxu0 0
    %2269 = vmatprep.subr.bf16.mxu0 0
    %2270 = vmatpush1.bf16.msra.mxu0 0
    %2271 = vmatprep.subr.bf16.mxu0 0
    %2272 = vmatpush1.bf16.msra.mxu0 0
    %2273 = vmatprep.subr.bf16.mxu0 0
    %2274 = vmatpush1.bf16.msra.mxu0 0
    %2275 = vmatprep.subr.bf16.mxu0 0
    %2276 = vmatpush1.bf16.msra.mxu0 0
    %2277 = vmatprep.subr.bf16.mxu0 0
    %2278 = vmatpush1.bf16.msra.mxu0 0
    %2279 = vmatprep.subr.bf16.mxu0 0
    %2280 = vmatpush1.bf16.msra.mxu0 0
    %2281 = vmatprep.subr.bf16.mxu0 0
    %2282 = vmatpush1.bf16.msra.mxu0 0
    %2283 = vmatprep.mubr.bf16.mxu0 0
    %2284 = vmatmul.mubr.bf16.gmra.mrb[0].mxu0 %v2206
    %v2285 = vpop.f32.mrb[0].mxu0
    %v2286 = vadd.f32 %v2246, %v2285
    %v2287 = vpop.f32.mrb[0].mxu0
    %v2288 = vpop.f32.mrb[0].mxu0
    %v2289 = vpop.f32.mrb[0].mxu0
    %2290 = vdwg.mxu0
    %2292 = vrot.lane.b32.xlu0 %v2286, 1
    %v2293 = vpop.permute.xlu0 %2292
    %vm2295 = vcmask 7168
    %v2296 = vsel %vm2295, %v2042, %v2293
    %vm2297 = vcmask 15360
    %2298 = vst.msk [vmem:[%s11] sm:$0xff] %vm2297, %v2296
    // Predicated region
    $region54: #{critic_forward.1} parent=1 // pred_check
      _
    $region55: #{critic_forward.1} parent=1 // pred_check_branch
      %2300 = sbr.rel (0) target = $region57
    $region56: #{critic_forward.1} parent=1 // pred_region
      _
    $region57: #{critic_forward.1} parent=1 // pred_fallthru
      _
    // Predicated region
    $region58: #{critic_forward.1} parent=1 // pred_check
      _
    $region59: #{critic_forward.1} parent=1 // pred_check_branch
      %2302 = sbr.rel (0) target = $region61
    $region60: #{critic_forward.1} parent=1 // pred_region
      _
    $region61: #{critic_forward.1} parent=1 // pred_fallthru
      _
    %2303 = vsyncpa [#allocation5], 1
    %2304 = vsyncpa [#allocation7], 1

</llo_original>
